<compile_context>
chip_gen: v7x
topology: tpu7x:2x2x1
jax: 0.10.0
libtpu: 0.0.40
codegen_flags: <defaults>
</compile_context>

<pallas_src>
import functools

import jax
import jax.numpy as jnp
from jax.experimental import pallas as pl
from jax.experimental.pallas import tpu as pltpu

INPUT_DIM = 1
HIDDEN = 32
NUM_BLOCKS = 4


def _cube(x):
    # ActivationCube: max(x**3, 0)
    return jnp.maximum(x * x * x, 0.0)


def ritz_kernel(x_ref, w_in_ref, b_in_ref, w1_ref, b1_ref, w2_ref, b2_ref,
                w_out_ref, b_out_ref, out_ref):
    """One batch tile; G points packed along lanes; weights are block-diagonal.

    Matmul operand dtype is taken from the (pre-cast) weights: bf16 for the
    fast path (single MXU pass, f32 accumulation) or f32 for the exact path.
    Bias add, cube activation and residual add are always f32.
    """
    num_blocks = w1_ref.shape[0]
    mm_dtype = w_in_ref.dtype

    # fc_in: (tile, G*D_in) @ (G*D_in, G*H)  -- thin K, single MXU pass.
    h = jnp.dot(x_ref[...].astype(mm_dtype), w_in_ref[...],
                preferred_element_type=jnp.float32) + b_in_ref[...]

    # Residual recurrent blocks (small static count -> python unroll).
    for i in range(num_blocks):
        retain = h
        t = _cube(jnp.dot(h.astype(mm_dtype), w1_ref[i],
                          preferred_element_type=jnp.float32) + b1_ref[i])
        t = _cube(jnp.dot(t.astype(mm_dtype), w2_ref[i],
                          preferred_element_type=jnp.float32) + b2_ref[i])
        h = t + retain

    # fc_out: (tile, G*H) @ (G*H, G) -> one scalar per packed point.
    out_ref[...] = jnp.dot(h.astype(mm_dtype), w_out_ref[...],
                           preferred_element_type=jnp.float32) + b_out_ref[...]


def _pack_params(params, groups, mm_dtype):
    """Expand per-layer weights into block-diagonal G-packed versions (exact).

    Weight matrices (MXU operands) are cast to mm_dtype; biases stay f32.
    """
    w_in, b_in, w1, b1, w2, b2, w_out, b_out = params
    g = groups
    d_in, h = w_in.shape
    nb = w1.shape[0]
    eye = jnp.eye(g, dtype=jnp.float32)

    # fc_in: (G*D_in, G*H) block-diagonal copies of the (D_in, H) weight.
    w_in_p = jnp.einsum("gk,dj->gdkj", eye, w_in).reshape(g * d_in, g * h)
    b_in_p = jnp.tile(b_in.reshape(1, h), (1, g))
    # residual blocks: (NB, G*H, G*H) block-diagonal copies of (H, H).
    w1_p = jnp.einsum("gk,nij->ngikj", eye, w1).reshape(nb, g * h, g * h)
    w2_p = jnp.einsum("gk,nij->ngikj", eye, w2).reshape(nb, g * h, g * h)
    b1_p = jnp.tile(b1.reshape(nb, 1, h), (1, 1, g))
    b2_p = jnp.tile(b2.reshape(nb, 1, h), (1, 1, g))
    # fc_out: (G*H, G) block-diagonal copies of the (H, 1) weight.
    w_out_p = jnp.einsum("gk,j->gjk", eye, w_out[:, 0]).reshape(g * h, g)
    # b_out tiled to (1, G): lane-aligned broadcast add in the kernel.
    b_out_p = jnp.tile(b_out.reshape(1, 1), (1, g))
    return (w_in_p.astype(mm_dtype), b_in_p,
            w1_p.astype(mm_dtype), b1_p,
            w2_p.astype(mm_dtype), b2_p,
            w_out_p.astype(mm_dtype), b_out_p)


def _default_groups():
    """G=8 fills a 256-wide MXU (v6e/v7x); G=4 for 128-wide MXUs (v5e & older)."""
    try:
        kind = jax.devices()[0].device_kind.lower()
    except Exception:
        return 8
    if any(tag in kind for tag in ("v2", "v3", "v4", "v5")):
        return 4
    return 8


def _choose_tiling(batch, groups, tile_rows, max_tile_rows):
    """Pick (tile_rows, n_tiles) in packed rows (each row = `groups` points).

    Auto mode maximizes the tile (up to max_tile_rows) while keeping the tile
    count EVEN so v7x's two TensorCores get a balanced "parallel" split.
    """
    rows = pl.cdiv(batch, groups)
    if tile_rows is None:
        n_tiles = max(2, pl.cdiv(rows, max_tile_rows))
        n_tiles += n_tiles % 2              # even split for 2 TCs on v7x
        tp = max(8, ((pl.cdiv(rows, n_tiles) + 7) // 8) * 8)
    else:
        tp = max(8, ((int(tile_rows) + 7) // 8) * 8)
        n_tiles = max(1, pl.cdiv(rows, tp))
    return tp, n_tiles


@functools.partial(
    jax.jit, static_argnames=("tile_rows", "n_tiles", "groups", "use_bf16"))
def _ritz_forward(x, params, *, tile_rows, n_tiles, groups, use_bf16):
    batch, d_in = x.shape
    g, tp = groups, tile_rows
    h = params[0].shape[1]
    nb = params[2].shape[0]
    gh = g * h
    mm_dtype = jnp.bfloat16 if use_bf16 else jnp.float32

    packed = _pack_params(params, g, mm_dtype)

    # Pad the batch to whole (tile_rows * groups) tiles, then pack G
    # consecutive points into the lane axis of each row (layout plumbing only).
    n_rows = tp * n_tiles
    batch_pad = n_rows * g
    xf = jnp.pad(x, ((0, batch_pad - batch), (0, 0)))
    x_p = xf.reshape(n_rows, g * d_in)

    const2 = lambda i: (0, 0)
    const3 = lambda i: (0, 0, 0)

    out_p = pl.pallas_call(
        ritz_kernel,
        out_shape=jax.ShapeDtypeStruct((n_rows, g), jnp.float32),
        grid=(n_tiles,),
        in_specs=[
            pl.BlockSpec((tp, g * d_in), lambda i: (i, 0)),   # x (packed)
            pl.BlockSpec((g * d_in, gh), const2),             # w_in  (block-diag, resident)
            pl.BlockSpec((1, gh), const2),                    # b_in
            pl.BlockSpec((nb, gh, gh), const3),               # w1    (block-diag, resident)
            pl.BlockSpec((nb, 1, gh), const3),                # b1
            pl.BlockSpec((nb, gh, gh), const3),               # w2    (block-diag, resident)
            pl.BlockSpec((nb, 1, gh), const3),                # b2
            pl.BlockSpec((gh, g), const2),                    # w_out (block-diag, resident)
            pl.BlockSpec((1, g), const2),                     # b_out (lane-tiled)
        ],
        out_specs=pl.BlockSpec((tp, g), lambda i: (i, 0)),
        compiler_params=pltpu.CompilerParams(
            dimension_semantics=("parallel",),   # v7x: batch tiles on 2 TCs
            vmem_limit_bytes=48 * 1024 * 1024,   # headroom for big tiles (v5e 16 MiB default)
        ),
    )(x_p, *packed)

    # Unpack (n_rows, G) -> (batch, 1); drop batch padding.
    return out_p.reshape(batch_pad, 1)[:batch]


def ritz_forward(x, params, *, tile_rows=None, groups=None, use_bf16=True,
                 max_tile_rows=1024):
    """u_theta = RitzModel(x). x: (batch, input_dim) f32 -> (batch, 1) f32.

    groups: points packed per lane row (auto: 8 on v6e/v7x, 4 on 128-wide-MXU
    chips). tile_rows: packed rows per grid step (auto: as large as possible,
    even tile count). use_bf16: bf16 MXU operands with f32 accumulation
    (fast path); False = exact f32 matmuls.
    """
    if groups is None:
        groups = _default_groups()
    tp, n_tiles = _choose_tiling(x.shape[0], groups, tile_rows, max_tile_rows)
    return _ritz_forward(x, params, tile_rows=tp, n_tiles=n_tiles,
                         groups=groups, use_bf16=bool(use_bf16))


def init_params(key, input_dim=INPUT_DIM, hidden=HIDDEN, num_blocks=NUM_BLOCKS):
    """Mirror the module init: Linear weights ~ N(0, 0.1); biases PyTorch-default
    uniform(-1/sqrt(fan_in), 1/sqrt(fan_in)). Weights stored as (in, out)."""
    ks = jax.random.split(key, 8)

    def unif(k, shape, fan_in):
        bound = 1.0 / (fan_in ** 0.5)
        return jax.random.uniform(k, shape, jnp.float32, -bound, bound)

    w_in = 0.1 * jax.random.normal(ks[0], (input_dim, hidden), jnp.float32)
    b_in = unif(ks[1], (1, hidden), input_dim)
    w1 = 0.1 * jax.random.normal(ks[2], (num_blocks, hidden, hidden), jnp.float32)
    b1 = unif(ks[3], (num_blocks, 1, hidden), hidden)
    w2 = 0.1 * jax.random.normal(ks[4], (num_blocks, hidden, hidden), jnp.float32)
    b2 = unif(ks[5], (num_blocks, 1, hidden), hidden)
    w_out = 0.1 * jax.random.normal(ks[6], (hidden, 1), jnp.float32)
    b_out = unif(ks[7], (1, 1), hidden)
    return (w_in, b_in, w1, b1, w2, b2, w_out, b_out)


def ritz_forward_ref(x, params, mm_dtype=jnp.float32):
    """Pure-JAX reference.  mm_dtype selects the matmul operand precision so the
    bf16 fast path can be checked against a matched-precision reference."""
    w_in, b_in, w1, b1, w2, b2, w_out, b_out = params
    prec = jax.lax.Precision.HIGHEST if mm_dtype == jnp.float32 else None

    def dot(a, b):
        return jnp.dot(a.astype(mm_dtype), b.astype(mm_dtype),
                       precision=prec, preferred_element_type=jnp.float32)

    h = dot(x, w_in) + b_in
    for i in range(w1.shape[0]):
        retain = h
        t = jnp.maximum((dot(h, w1[i]) + b1[i]) ** 3, 0.0)
        t = jnp.maximum((dot(t, w2[i]) + b2[i]) ** 3, 0.0)
        h = t + retain
    return dot(h, w_out) + b_out


if __name__ == "__main__":
    key = jax.random.PRNGKey(0)
    k_p, k_x1, k_x2 = jax.random.split(key, 3)
    params = init_params(k_p)

    # 1) Exact f32 path, single tiny tile: validates packing / kernel semantics.
    x_small = jax.random.normal(k_x1, (8, INPUT_DIM), jnp.float32)
    y_small = jax.block_until_ready(
        ritz_forward(x_small, params, tile_rows=8, groups=8, use_bf16=False))
    y_small_ref = ritz_forward_ref(x_small, params)
    assert y_small.shape == (8, 1)
    err_s = float(jnp.max(jnp.abs(y_small - y_small_ref)))
    assert jnp.allclose(y_small, y_small_ref, atol=1e-4, rtol=1e-4), err_s

    # 2) Exact f32 path across the auto-tiled grid (even tile count, batch
    #    padding, device-dependent groups).
    x_big = jax.random.normal(k_x2, (2500, INPUT_DIM), jnp.float32)
    y_f32 = jax.block_until_ready(ritz_forward(x_big, params, use_bf16=False))
    y_ref_f32 = ritz_forward_ref(x_big, params)
    assert y_f32.shape == (2500, 1)
    err_f = float(jnp.max(jnp.abs(y_f32 - y_ref_f32)))
    assert jnp.allclose(y_f32, y_ref_f32, atol=1e-3, rtol=1e-3), err_f

    # 3) Default fast path: bf16 MXU operands / f32 accumulation, checked
    #    against a matched bf16-operand reference.
    y_bf16 = jax.block_until_ready(ritz_forward(x_big, params))
    y_ref_bf16 = ritz_forward_ref(x_big, params, mm_dtype=jnp.bfloat16)
    assert y_bf16.shape == (2500, 1)
    err_b = float(jnp.max(jnp.abs(y_bf16 - y_ref_bf16)))
    assert jnp.allclose(y_bf16, y_ref_bf16, atol=2e-3, rtol=2e-3), err_b

    print("KERNEL_OK")
</pallas_src>

<mosaic_0001>
module attributes {stable_mosaic.version = 11 : i64} {
  func.func @ritz_kernel(%arg0: i32, %arg1: memref<8x8xf32, #tpu.memory_space<vmem>>, %arg2: memref<8x256xf32, #tpu.memory_space<vmem>>, %arg3: memref<1x256xf32, #tpu.memory_space<vmem>>, %arg4: memref<4x256x256xf32, #tpu.memory_space<vmem>>, %arg5: memref<4x1x256xf32, #tpu.memory_space<vmem>>, %arg6: memref<4x256x256xf32, #tpu.memory_space<vmem>>, %arg7: memref<4x1x256xf32, #tpu.memory_space<vmem>>, %arg8: memref<256x8xf32, #tpu.memory_space<vmem>>, %arg9: memref<1x8xf32, #tpu.memory_space<vmem>>, %arg10: memref<8x8xf32, #tpu.memory_space<vmem>>) attributes {dimension_semantics = [#tpu.dimension_semantics<parallel>], iteration_bounds = array<i64: 1>, scalar_prefetch = 0 : i64, scratch_operands = 0 : i64, tpu.core_type = #tpu.core_type<tc>, window_params = [{transform_indices = @transform_0, window_bounds = array<i64: 8, 8>}, {pipeline_mode = #tpu.pipeline_mode<synchronous>, transform_indices = @transform_1, window_bounds = array<i64: 8, 256>}, {pipeline_mode = #tpu.pipeline_mode<synchronous>, transform_indices = @transform_2, window_bounds = array<i64: 1, 256>}, {pipeline_mode = #tpu.pipeline_mode<synchronous>, transform_indices = @transform_3, window_bounds = array<i64: 4, 256, 256>}, {pipeline_mode = #tpu.pipeline_mode<synchronous>, transform_indices = @transform_4, window_bounds = array<i64: 4, 1, 256>}, {pipeline_mode = #tpu.pipeline_mode<synchronous>, transform_indices = @transform_5, window_bounds = array<i64: 4, 256, 256>}, {pipeline_mode = #tpu.pipeline_mode<synchronous>, transform_indices = @transform_6, window_bounds = array<i64: 4, 1, 256>}, {pipeline_mode = #tpu.pipeline_mode<synchronous>, transform_indices = @transform_7, window_bounds = array<i64: 256, 8>}, {pipeline_mode = #tpu.pipeline_mode<synchronous>, transform_indices = @transform_8, window_bounds = array<i64: 1, 8>}, {transform_indices = @transform_9, window_bounds = array<i64: 8, 8>}]} {
    %c0 = arith.constant 0 : index
    %c0_0 = arith.constant 0 : index
    %0 = vector.load %arg1[%c0, %c0_0] : memref<8x8xf32, #tpu.memory_space<vmem>>, vector<8x8xf32>
    %c0_1 = arith.constant 0 : index
    %c0_2 = arith.constant 0 : index
    %1 = vector.load %arg2[%c0_1, %c0_2] : memref<8x256xf32, #tpu.memory_space<vmem>>, vector<8x256xf32>
    %cst = arith.constant dense<0.000000e+00> : vector<8x256xf32>
    %2 = tpu.matmul %0, %1, %cst {dimension_numbers = #tpu.dot_dimension_numbers<[1], [0], [0], [1], [0, 0, 1, 1], [], []>} : vector<8x8xf32>, vector<8x256xf32>, vector<8x256xf32> -> vector<8x256xf32>
    %c0_3 = arith.constant 0 : index
    %c0_4 = arith.constant 0 : index
    %3 = vector.load %arg3[%c0_3, %c0_4] : memref<1x256xf32, #tpu.memory_space<vmem>>, vector<1x256xf32>
    %4 = vector.broadcast %3 : vector<1x256xf32> to vector<8x256xf32>
    %5 = arith.addf %2, %4 : vector<8x256xf32>
    %c0_5 = arith.constant 0 : index
    %c0_6 = arith.constant 0 : index
    %c0_7 = arith.constant 0 : index
    %6 = vector.load %arg4[%c0_5, %c0_6, %c0_7] : memref<4x256x256xf32, #tpu.memory_space<vmem>>, vector<1x256x256xf32>
    %7 = vector.shape_cast %6 : vector<1x256x256xf32> to vector<256x256xf32>
    %cst_8 = arith.constant dense<0.000000e+00> : vector<8x256xf32>
    %8 = tpu.matmul %5, %7, %cst_8 {dimension_numbers = #tpu.dot_dimension_numbers<[1], [0], [0], [1], [0, 0, 1, 1], [], []>} : vector<8x256xf32>, vector<256x256xf32>, vector<8x256xf32> -> vector<8x256xf32>
    %c0_9 = arith.constant 0 : index
    %c0_10 = arith.constant 0 : index
    %c0_11 = arith.constant 0 : index
    %9 = vector.load %arg5[%c0_9, %c0_10, %c0_11] : memref<4x1x256xf32, #tpu.memory_space<vmem>>, vector<1x1x256xf32>
    %10 = vector.shape_cast %9 : vector<1x1x256xf32> to vector<1x256xf32>
    %11 = vector.broadcast %10 : vector<1x256xf32> to vector<8x256xf32>
    %12 = arith.addf %8, %11 : vector<8x256xf32>
    %13 = arith.mulf %12, %12 : vector<8x256xf32>
    %14 = arith.mulf %13, %12 : vector<8x256xf32>
    %cst_12 = arith.constant 0.000000e+00 : f32
    %15 = vector.broadcast %cst_12 : f32 to vector<8x256xf32>
    %16 = arith.maximumf %14, %15 : vector<8x256xf32>
    %c0_13 = arith.constant 0 : index
    %c0_14 = arith.constant 0 : index
    %c0_15 = arith.constant 0 : index
    %17 = vector.load %arg6[%c0_13, %c0_14, %c0_15] : memref<4x256x256xf32, #tpu.memory_space<vmem>>, vector<1x256x256xf32>
    %18 = vector.shape_cast %17 : vector<1x256x256xf32> to vector<256x256xf32>
    %cst_16 = arith.constant dense<0.000000e+00> : vector<8x256xf32>
    %19 = tpu.matmul %16, %18, %cst_16 {dimension_numbers = #tpu.dot_dimension_numbers<[1], [0], [0], [1], [0, 0, 1, 1], [], []>} : vector<8x256xf32>, vector<256x256xf32>, vector<8x256xf32> -> vector<8x256xf32>
    %c0_17 = arith.constant 0 : index
    %c0_18 = arith.constant 0 : index
    %c0_19 = arith.constant 0 : index
    %20 = vector.load %arg7[%c0_17, %c0_18, %c0_19] : memref<4x1x256xf32, #tpu.memory_space<vmem>>, vector<1x1x256xf32>
    %21 = vector.shape_cast %20 : vector<1x1x256xf32> to vector<1x256xf32>
    %22 = vector.broadcast %21 : vector<1x256xf32> to vector<8x256xf32>
    %23 = arith.addf %19, %22 : vector<8x256xf32>
    %24 = arith.mulf %23, %23 : vector<8x256xf32>
    %25 = arith.mulf %24, %23 : vector<8x256xf32>
    %cst_20 = arith.constant 0.000000e+00 : f32
    %26 = vector.broadcast %cst_20 : f32 to vector<8x256xf32>
    %27 = arith.maximumf %25, %26 : vector<8x256xf32>
    %28 = arith.addf %27, %5 : vector<8x256xf32>
    %c1 = arith.constant 1 : index
    %c0_21 = arith.constant 0 : index
    %c0_22 = arith.constant 0 : index
    %29 = vector.load %arg4[%c1, %c0_21, %c0_22] : memref<4x256x256xf32, #tpu.memory_space<vmem>>, vector<1x256x256xf32>
    %30 = vector.shape_cast %29 : vector<1x256x256xf32> to vector<256x256xf32>
    %cst_23 = arith.constant dense<0.000000e+00> : vector<8x256xf32>
    %31 = tpu.matmul %28, %30, %cst_23 {dimension_numbers = #tpu.dot_dimension_numbers<[1], [0], [0], [1], [0, 0, 1, 1], [], []>} : vector<8x256xf32>, vector<256x256xf32>, vector<8x256xf32> -> vector<8x256xf32>
    %c1_24 = arith.constant 1 : index
    %c0_25 = arith.constant 0 : index
    %c0_26 = arith.constant 0 : index
    %32 = vector.load %arg5[%c1_24, %c0_25, %c0_26] : memref<4x1x256xf32, #tpu.memory_space<vmem>>, vector<1x1x256xf32>
    %33 = vector.shape_cast %32 : vector<1x1x256xf32> to vector<1x256xf32>
    %34 = vector.broadcast %33 : vector<1x256xf32> to vector<8x256xf32>
    %35 = arith.addf %31, %34 : vector<8x256xf32>
    %36 = arith.mulf %35, %35 : vector<8x256xf32>
    %37 = arith.mulf %36, %35 : vector<8x256xf32>
    %cst_27 = arith.constant 0.000000e+00 : f32
    %38 = vector.broadcast %cst_27 : f32 to vector<8x256xf32>
    %39 = arith.maximumf %37, %38 : vector<8x256xf32>
    %c1_28 = arith.constant 1 : index
    %c0_29 = arith.constant 0 : index
    %c0_30 = arith.constant 0 : index
    %40 = vector.load %arg6[%c1_28, %c0_29, %c0_30] : memref<4x256x256xf32, #tpu.memory_space<vmem>>, vector<1x256x256xf32>
    %41 = vector.shape_cast %40 : vector<1x256x256xf32> to vector<256x256xf32>
    %cst_31 = arith.constant dense<0.000000e+00> : vector<8x256xf32>
    %42 = tpu.matmul %39, %41, %cst_31 {dimension_numbers = #tpu.dot_dimension_numbers<[1], [0], [0], [1], [0, 0, 1, 1], [], []>} : vector<8x256xf32>, vector<256x256xf32>, vector<8x256xf32> -> vector<8x256xf32>
    %c1_32 = arith.constant 1 : index
    %c0_33 = arith.constant 0 : index
    %c0_34 = arith.constant 0 : index
    %43 = vector.load %arg7[%c1_32, %c0_33, %c0_34] : memref<4x1x256xf32, #tpu.memory_space<vmem>>, vector<1x1x256xf32>
    %44 = vector.shape_cast %43 : vector<1x1x256xf32> to vector<1x256xf32>
    %45 = vector.broadcast %44 : vector<1x256xf32> to vector<8x256xf32>
    %46 = arith.addf %42, %45 : vector<8x256xf32>
    %47 = arith.mulf %46, %46 : vector<8x256xf32>
    %48 = arith.mulf %47, %46 : vector<8x256xf32>
    %cst_35 = arith.constant 0.000000e+00 : f32
    %49 = vector.broadcast %cst_35 : f32 to vector<8x256xf32>
    %50 = arith.maximumf %48, %49 : vector<8x256xf32>
    %51 = arith.addf %50, %28 : vector<8x256xf32>
    %c2 = arith.constant 2 : index
    %c0_36 = arith.constant 0 : index
    %c0_37 = arith.constant 0 : index
    %52 = vector.load %arg4[%c2, %c0_36, %c0_37] : memref<4x256x256xf32, #tpu.memory_space<vmem>>, vector<1x256x256xf32>
    %53 = vector.shape_cast %52 : vector<1x256x256xf32> to vector<256x256xf32>
    %cst_38 = arith.constant dense<0.000000e+00> : vector<8x256xf32>
    %54 = tpu.matmul %51, %53, %cst_38 {dimension_numbers = #tpu.dot_dimension_numbers<[1], [0], [0], [1], [0, 0, 1, 1], [], []>} : vector<8x256xf32>, vector<256x256xf32>, vector<8x256xf32> -> vector<8x256xf32>
    %c2_39 = arith.constant 2 : index
    %c0_40 = arith.constant 0 : index
    %c0_41 = arith.constant 0 : index
    %55 = vector.load %arg5[%c2_39, %c0_40, %c0_41] : memref<4x1x256xf32, #tpu.memory_space<vmem>>, vector<1x1x256xf32>
    %56 = vector.shape_cast %55 : vector<1x1x256xf32> to vector<1x256xf32>
    %57 = vector.broadcast %56 : vector<1x256xf32> to vector<8x256xf32>
    %58 = arith.addf %54, %57 : vector<8x256xf32>
    %59 = arith.mulf %58, %58 : vector<8x256xf32>
    %60 = arith.mulf %59, %58 : vector<8x256xf32>
    %cst_42 = arith.constant 0.000000e+00 : f32
    %61 = vector.broadcast %cst_42 : f32 to vector<8x256xf32>
    %62 = arith.maximumf %60, %61 : vector<8x256xf32>
    %c2_43 = arith.constant 2 : index
    %c0_44 = arith.constant 0 : index
    %c0_45 = arith.constant 0 : index
    %63 = vector.load %arg6[%c2_43, %c0_44, %c0_45] : memref<4x256x256xf32, #tpu.memory_space<vmem>>, vector<1x256x256xf32>
    %64 = vector.shape_cast %63 : vector<1x256x256xf32> to vector<256x256xf32>
    %cst_46 = arith.constant dense<0.000000e+00> : vector<8x256xf32>
    %65 = tpu.matmul %62, %64, %cst_46 {dimension_numbers = #tpu.dot_dimension_numbers<[1], [0], [0], [1], [0, 0, 1, 1], [], []>} : vector<8x256xf32>, vector<256x256xf32>, vector<8x256xf32> -> vector<8x256xf32>
    %c2_47 = arith.constant 2 : index
    %c0_48 = arith.constant 0 : index
    %c0_49 = arith.constant 0 : index
    %66 = vector.load %arg7[%c2_47, %c0_48, %c0_49] : memref<4x1x256xf32, #tpu.memory_space<vmem>>, vector<1x1x256xf32>
    %67 = vector.shape_cast %66 : vector<1x1x256xf32> to vector<1x256xf32>
    %68 = vector.broadcast %67 : vector<1x256xf32> to vector<8x256xf32>
    %69 = arith.addf %65, %68 : vector<8x256xf32>
    %70 = arith.mulf %69, %69 : vector<8x256xf32>
    %71 = arith.mulf %70, %69 : vector<8x256xf32>
    %cst_50 = arith.constant 0.000000e+00 : f32
    %72 = vector.broadcast %cst_50 : f32 to vector<8x256xf32>
    %73 = arith.maximumf %71, %72 : vector<8x256xf32>
    %74 = arith.addf %73, %51 : vector<8x256xf32>
    %c3 = arith.constant 3 : index
    %c0_51 = arith.constant 0 : index
    %c0_52 = arith.constant 0 : index
    %75 = vector.load %arg4[%c3, %c0_51, %c0_52] : memref<4x256x256xf32, #tpu.memory_space<vmem>>, vector<1x256x256xf32>
    %76 = vector.shape_cast %75 : vector<1x256x256xf32> to vector<256x256xf32>
    %cst_53 = arith.constant dense<0.000000e+00> : vector<8x256xf32>
    %77 = tpu.matmul %74, %76, %cst_53 {dimension_numbers = #tpu.dot_dimension_numbers<[1], [0], [0], [1], [0, 0, 1, 1], [], []>} : vector<8x256xf32>, vector<256x256xf32>, vector<8x256xf32> -> vector<8x256xf32>
    %c3_54 = arith.constant 3 : index
    %c0_55 = arith.constant 0 : index
    %c0_56 = arith.constant 0 : index
    %78 = vector.load %arg5[%c3_54, %c0_55, %c0_56] : memref<4x1x256xf32, #tpu.memory_space<vmem>>, vector<1x1x256xf32>
    %79 = vector.shape_cast %78 : vector<1x1x256xf32> to vector<1x256xf32>
    %80 = vector.broadcast %79 : vector<1x256xf32> to vector<8x256xf32>
    %81 = arith.addf %77, %80 : vector<8x256xf32>
    %82 = arith.mulf %81, %81 : vector<8x256xf32>
    %83 = arith.mulf %82, %81 : vector<8x256xf32>
    %cst_57 = arith.constant 0.000000e+00 : f32
    %84 = vector.broadcast %cst_57 : f32 to vector<8x256xf32>
    %85 = arith.maximumf %83, %84 : vector<8x256xf32>
    %c3_58 = arith.constant 3 : index
    %c0_59 = arith.constant 0 : index
    %c0_60 = arith.constant 0 : index
    %86 = vector.load %arg6[%c3_58, %c0_59, %c0_60] : memref<4x256x256xf32, #tpu.memory_space<vmem>>, vector<1x256x256xf32>
    %87 = vector.shape_cast %86 : vector<1x256x256xf32> to vector<256x256xf32>
    %cst_61 = arith.constant dense<0.000000e+00> : vector<8x256xf32>
    %88 = tpu.matmul %85, %87, %cst_61 {dimension_numbers = #tpu.dot_dimension_numbers<[1], [0], [0], [1], [0, 0, 1, 1], [], []>} : vector<8x256xf32>, vector<256x256xf32>, vector<8x256xf32> -> vector<8x256xf32>
    %c3_62 = arith.constant 3 : index
    %c0_63 = arith.constant 0 : index
    %c0_64 = arith.constant 0 : index
    %89 = vector.load %arg7[%c3_62, %c0_63, %c0_64] : memref<4x1x256xf32, #tpu.memory_space<vmem>>, vector<1x1x256xf32>
    %90 = vector.shape_cast %89 : vector<1x1x256xf32> to vector<1x256xf32>
    %91 = vector.broadcast %90 : vector<1x256xf32> to vector<8x256xf32>
    %92 = arith.addf %88, %91 : vector<8x256xf32>
    %93 = arith.mulf %92, %92 : vector<8x256xf32>
    %94 = arith.mulf %93, %92 : vector<8x256xf32>
    %cst_65 = arith.constant 0.000000e+00 : f32
    %95 = vector.broadcast %cst_65 : f32 to vector<8x256xf32>
    %96 = arith.maximumf %94, %95 : vector<8x256xf32>
    %97 = arith.addf %96, %74 : vector<8x256xf32>
    %c0_66 = arith.constant 0 : index
    %c0_67 = arith.constant 0 : index
    %98 = vector.load %arg8[%c0_66, %c0_67] : memref<256x8xf32, #tpu.memory_space<vmem>>, vector<256x8xf32>
    %cst_68 = arith.constant dense<0.000000e+00> : vector<8x8xf32>
    %99 = tpu.matmul %97, %98, %cst_68 {dimension_numbers = #tpu.dot_dimension_numbers<[1], [0], [0], [1], [0, 0, 1, 1], [], []>} : vector<8x256xf32>, vector<256x8xf32>, vector<8x8xf32> -> vector<8x8xf32>
    %c0_69 = arith.constant 0 : index
    %c0_70 = arith.constant 0 : index
    %100 = vector.load %arg9[%c0_69, %c0_70] : memref<1x8xf32, #tpu.memory_space<vmem>>, vector<1x8xf32>
    %101 = vector.broadcast %100 : vector<1x8xf32> to vector<8x8xf32>
    %102 = arith.addf %99, %101 : vector<8x8xf32>
    %c0_71 = arith.constant 0 : index
    %c0_72 = arith.constant 0 : index
    %103 = vector.load %arg10[%c0_71, %c0_72] : memref<8x8xf32, #tpu.memory_space<vmem>>, vector<8x8xf32>
    tpu.vector_store %arg10[%c0_71, %c0_72], %102 {strides = array<i32>} : memref<8x8xf32, #tpu.memory_space<vmem>>, vector<8x8xf32>,
    return
  }
  func.func @transform_0(%arg0: i32) -> (i32, i32) {
    %c0_i32 = arith.constant 0 : i32
    %c0_i32_0 = arith.constant 0 : i32
    return %arg0, %c0_i32 : i32, i32
  }
  func.func @transform_1(%arg0: i32) -> (i32, i32) {
    %c0_i32 = arith.constant 0 : i32
    %c0_i32_0 = arith.constant 0 : i32
    %c0_i32_1 = arith.constant 0 : i32
    return %c0_i32, %c0_i32_0 : i32, i32
  }
  func.func @transform_2(%arg0: i32) -> (i32, i32) {
    %c0_i32 = arith.constant 0 : i32
    %c0_i32_0 = arith.constant 0 : i32
    %c0_i32_1 = arith.constant 0 : i32
    return %c0_i32, %c0_i32_0 : i32, i32
  }
  func.func @transform_3(%arg0: i32) -> (i32, i32, i32) {
    %c0_i32 = arith.constant 0 : i32
    %c0_i32_0 = arith.constant 0 : i32
    %c0_i32_1 = arith.constant 0 : i32
    %c0_i32_2 = arith.constant 0 : i32
    return %c0_i32, %c0_i32_0, %c0_i32_1 : i32, i32, i32
  }
  func.func @transform_4(%arg0: i32) -> (i32, i32, i32) {
    %c0_i32 = arith.constant 0 : i32
    %c0_i32_0 = arith.constant 0 : i32
    %c0_i32_1 = arith.constant 0 : i32
    %c0_i32_2 = arith.constant 0 : i32
    return %c0_i32, %c0_i32_0, %c0_i32_1 : i32, i32, i32
  }
  func.func @transform_5(%arg0: i32) -> (i32, i32, i32) {
    %c0_i32 = arith.constant 0 : i32
    %c0_i32_0 = arith.constant 0 : i32
    %c0_i32_1 = arith.constant 0 : i32
    %c0_i32_2 = arith.constant 0 : i32
    return %c0_i32, %c0_i32_0, %c0_i32_1 : i32, i32, i32
  }
  func.func @transform_6(%arg0: i32) -> (i32, i32, i32) {
    %c0_i32 = arith.constant 0 : i32
    %c0_i32_0 = arith.constant 0 : i32
    %c0_i32_1 = arith.constant 0 : i32
    %c0_i32_2 = arith.constant 0 : i32
    return %c0_i32, %c0_i32_0, %c0_i32_1 : i32, i32, i32
  }
  func.func @transform_7(%arg0: i32) -> (i32, i32) {
    %c0_i32 = arith.constant 0 : i32
    %c0_i32_0 = arith.constant 0 : i32
    %c0_i32_1 = arith.constant 0 : i32
    return %c0_i32, %c0_i32_0 : i32, i32
  }
  func.func @transform_8(%arg0: i32) -> (i32, i32) {
    %c0_i32 = arith.constant 0 : i32
    %c0_i32_0 = arith.constant 0 : i32
    %c0_i32_1 = arith.constant 0 : i32
    return %c0_i32, %c0_i32_0 : i32, i32
  }
  func.func @transform_9(%arg0: i32) -> (i32, i32) {
    %c0_i32 = arith.constant 0 : i32
    %c0_i32_0 = arith.constant 0 : i32
    return %arg0, %c0_i32 : i32, i32
  }
}

</mosaic_0001>

<llo_original>
// kernel: _ritz_forward.1
$region0: #{_ritz_forward.1}
  #allocation0 [shape = 'u32[]', space=smem, size = 0x4, offset = 0x4, fixed_abs, tag = 'smem constant byte address 0x4 - core index']
  #allocation1 [shape = 'u32[144,128]{1,0:T(1,128)}', space=vmem, size = 0x12000, scoped, tag = 'internal scratch']
  %s0 = inlined_call_operand.vmem [shape: f32[8,8], index: 0, kind: input, shape index: {}]
  %s1 = inlined_call_operand.vmem [shape: f32[8,256], index: 1, kind: input, shape index: {}]
  %s2 = inlined_call_operand.vmem [shape: f32[1,256], index: 2, kind: input, shape index: {}]
  %s3 = inlined_call_operand.vmem [shape: f32[4,256,256], index: 3, kind: input, shape index: {}]
  %s4 = inlined_call_operand.vmem [shape: f32[4,1,256], index: 4, kind: input, shape index: {}]
  %s5 = inlined_call_operand.vmem [shape: f32[4,256,256], index: 5, kind: input, shape index: {}]
  %s6 = inlined_call_operand.vmem [shape: f32[4,1,256], index: 6, kind: input, shape index: {}]
  %s7 = inlined_call_operand.vmem [shape: f32[256,8], index: 7, kind: input, shape index: {}]
  %s8 = inlined_call_operand.vmem [shape: f32[1,8], index: 8, kind: input, shape index: {}]
  %s9 = inlined_call_operand.vmem [shape: f32[8,8], index: 9, kind: output, shape index: {}]
  %s10 = sld [smem:[#allocation0]]
  $region46: #{_ritz_forward.1} parent=0
    _
  %s12 = ssub.s32 1, %s10
  %s13 = scalar_select 0, %s12, %s10
  // Predicated region
  $region2: #{_ritz_forward.1} parent=0 // pred_check
    _
  $region3: #{_ritz_forward.1} parent=0 // pred_check_branch
    %15 = sbr.rel (0) target = $region5
  $region4: #{_ritz_forward.1} parent=0 // pred_region
    _
  $region5: #{_ritz_forward.1} parent=0 // pred_fallthru
    _
  // Predicated region
  $region6: #{_ritz_forward.1} parent=0 // pred_check
    _
  $region7: #{_ritz_forward.1} parent=0 // pred_check_branch
    %17 = sbr.rel (0) target = $region9
  $region8: #{_ritz_forward.1} parent=0 // pred_region
    _
  $region9: #{_ritz_forward.1} parent=0 // pred_fallthru
    _
  // Predicated region
  $region10: #{_ritz_forward.1} parent=0 // pred_check
    _
  $region11: #{_ritz_forward.1} parent=0 // pred_check_branch
    %19 = sbr.rel (0) target = $region13
  $region12: #{_ritz_forward.1} parent=0 // pred_region
    _
  $region13: #{_ritz_forward.1} parent=0 // pred_fallthru
    _
  // Predicated region
  $region14: #{_ritz_forward.1} parent=0 // pred_check
    _
  $region15: #{_ritz_forward.1} parent=0 // pred_check_branch
    %21 = sbr.rel (0) target = $region17
  $region16: #{_ritz_forward.1} parent=0 // pred_region
    _
  $region17: #{_ritz_forward.1} parent=0 // pred_fallthru
    _
  // Predicated region
  $region18: #{_ritz_forward.1} parent=0 // pred_check
    _
  $region19: #{_ritz_forward.1} parent=0 // pred_check_branch
    %23 = sbr.rel (0) target = $region21
  $region20: #{_ritz_forward.1} parent=0 // pred_region
    _
  $region21: #{_ritz_forward.1} parent=0 // pred_fallthru
    _
  // Predicated region
  $region22: #{_ritz_forward.1} parent=0 // pred_check
    _
  $region23: #{_ritz_forward.1} parent=0 // pred_check_branch
    %25 = sbr.rel (0) target = $region25
  $region24: #{_ritz_forward.1} parent=0 // pred_region
    _
  $region25: #{_ritz_forward.1} parent=0 // pred_fallthru
    _
  // Predicated region
  $region26: #{_ritz_forward.1} parent=0 // pred_check
    _
  $region27: #{_ritz_forward.1} parent=0 // pred_check_branch
    %27 = sbr.rel (0) target = $region29
  $region28: #{_ritz_forward.1} parent=0 // pred_region
    _
  $region29: #{_ritz_forward.1} parent=0 // pred_fallthru
    _
  // Predicated region
  $region30: #{_ritz_forward.1} parent=0 // pred_check
    _
  $region31: #{_ritz_forward.1} parent=0 // pred_check_branch
    %29 = sbr.rel (0) target = $region33
  $region32: #{_ritz_forward.1} parent=0 // pred_region
    _
  $region33: #{_ritz_forward.1} parent=0 // pred_fallthru
    _
  // Predicated region
  $region34: #{_ritz_forward.1} parent=0 // pred_check
    _
  $region35: #{_ritz_forward.1} parent=0 // pred_check_branch
    %31 = sbr.rel (0) target = $region37
  $region36: #{_ritz_forward.1} parent=0 // pred_region
    _
  $region37: #{_ritz_forward.1} parent=0 // pred_fallthru
    _
  %v32 = vld [vmem:[%s0] sm:$0xff]
  %v33 = vld [vmem:[%s1] sm:$0xff]
  %v34 = vld [vmem:[%s1 + $0x8] sm:$0xff]
  %v35 = vld [vmem:[%s2] sm:$0x3]
  %v37 = vlaneseq
  %v38 = vshrl.u32 %v37, 7
  %v39 = vsub.s32 0, %v38
  %v40 = vrot.slane %v35, %v39
  %v41 = vlaneseq
  %v42 = vshrl.u32 %v41, 7
  %v43 = vsub.s32 1, %v42
  %v44 = vrot.slane %v35, %v43
  %vm47 = vcmask 64512
  %v49 = vsel %vm47, %v32, 0
  %51 = vmatprep.subr.mxu0 %v34
  %52 = vmatpush1.msra.mxu0 %v33
  %53 = vmatprep.subr.mxu0 0.0
  %54 = vmatpush1.msra.mxu0 0.0
  %55 = vmatprep.subr.mxu0 0.0
  %56 = vmatpush1.msra.mxu0 0.0
  %57 = vmatprep.subr.mxu0 0.0
  %58 = vmatpush1.msra.mxu0 0.0
  %59 = vmatprep.subr.mxu0 0.0
  %60 = vmatpush1.msra.mxu0 0.0
  %61 = vmatprep.subr.mxu0 0.0
  %62 = vmatpush1.msra.mxu0 0.0
  %63 = vmatprep.subr.mxu0 0.0
  %64 = vmatpush1.msra.mxu0 0.0
  %65 = vmatprep.subr.mxu0 0.0
  %66 = vmatpush1.msra.mxu0 0.0
  %67 = vmatprep.subr.mxu0 0.0
  %68 = vmatpush1.msra.mxu0 0.0
  %69 = vmatprep.subr.mxu0 0.0
  %70 = vmatpush1.msra.mxu0 0.0
  %71 = vmatprep.subr.mxu0 0.0
  %72 = vmatpush1.msra.mxu0 0.0
  %73 = vmatprep.subr.mxu0 0.0
  %74 = vmatpush1.msra.mxu0 0.0
  %75 = vmatprep.subr.mxu0 0.0
  %76 = vmatpush1.msra.mxu0 0.0
  %77 = vmatprep.subr.mxu0 0.0
  %78 = vmatpush1.msra.mxu0 0.0
  %79 = vmatprep.subr.mxu0 0.0
  %80 = vmatpush1.msra.mxu0 0.0
  %81 = vmatprep.subr.mxu0 0.0
  %82 = vmatpush1.msra.mxu0 0.0
  %83 = vmatprep.subr.mxu0 0.0
  %84 = vmatpush1.msra.mxu0 0.0
  %85 = vmatprep.subr.mxu0 0.0
  %86 = vmatpush1.msra.mxu0 0.0
  %87 = vmatprep.subr.mxu0 0.0
  %88 = vmatpush1.msra.mxu0 0.0
  %89 = vmatprep.subr.mxu0 0.0
  %90 = vmatpush1.msra.mxu0 0.0
  %91 = vmatprep.subr.mxu0 0.0
  %92 = vmatpush1.msra.mxu0 0.0
  %93 = vmatprep.subr.mxu0 0.0
  %94 = vmatpush1.msra.mxu0 0.0
  %95 = vmatprep.subr.mxu0 0.0
  %96 = vmatpush1.msra.mxu0 0.0
  %97 = vmatprep.subr.mxu0 0.0
  %98 = vmatpush1.msra.mxu0 0.0
  %99 = vmatprep.subr.mxu0 0.0
  %100 = vmatpush1.msra.mxu0 0.0
  %101 = vmatprep.subr.mxu0 0.0
  %102 = vmatpush1.msra.mxu0 0.0
  %103 = vmatprep.subr.mxu0 0.0
  %104 = vmatpush1.msra.mxu0 0.0
  %105 = vmatprep.subr.mxu0 0.0
  %106 = vmatpush1.msra.mxu0 0.0
  %107 = vmatprep.subr.mxu0 0.0
  %108 = vmatpush1.msra.mxu0 0.0
  %109 = vmatprep.subr.mxu0 0.0
  %110 = vmatpush1.msra.mxu0 0.0
  %111 = vmatprep.subr.mxu0 0.0
  %112 = vmatpush1.msra.mxu0 0.0
  %113 = vmatprep.subr.mxu0 0.0
  %114 = vmatpush1.msra.mxu0 0.0
  %115 = vmatprep.mubr.f32.mxu0 0.0
  %116 = vmatmul.mubr.f32.gmra.mrb[0].mxu0 %v49
  %v117 = vpop.f32.mrb[0].mxu0
  %v118 = vadd.f32 %v40, %v117
  %v119 = vpop.f32.mrb[0].mxu0
  %v120 = vadd.f32 %v44, %v119
  %121 = vdwg.mxu0
  %v122 = vld [vmem:[%s3] sm:$0xff]
  %v123 = vld [vmem:[%s3 + $0x8] sm:$0xff]
  %v124 = vld [vmem:[%s3 + $0x10] sm:$0xff]
  %v125 = vld [vmem:[%s3 + $0x18] sm:$0xff]
  %v126 = vld [vmem:[%s3 + $0x20] sm:$0xff]
  %v127 = vld [vmem:[%s3 + $0x28] sm:$0xff]
  %v128 = vld [vmem:[%s3 + $0x30] sm:$0xff]
  %v129 = vld [vmem:[%s3 + $0x38] sm:$0xff]
  %v130 = vld [vmem:[%s3 + $0x40] sm:$0xff]
  %v131 = vld [vmem:[%s3 + $0x48] sm:$0xff]
  %v132 = vld [vmem:[%s3 + $0x50] sm:$0xff]
  %v133 = vld [vmem:[%s3 + $0x58] sm:$0xff]
  %v134 = vld [vmem:[%s3 + $0x60] sm:$0xff]
  %v135 = vld [vmem:[%s3 + $0x68] sm:$0xff]
  %v136 = vld [vmem:[%s3 + $0x70] sm:$0xff]
  %v137 = vld [vmem:[%s3 + $0x78] sm:$0xff]
  %v138 = vld [vmem:[%s3 + $0x80] sm:$0xff]
  %v139 = vld [vmem:[%s3 + $0x88] sm:$0xff]
  %v140 = vld [vmem:[%s3 + $0x90] sm:$0xff]
  %v141 = vld [vmem:[%s3 + $0x98] sm:$0xff]
  %v142 = vld [vmem:[%s3 + $0xa0] sm:$0xff]
  %v143 = vld [vmem:[%s3 + $0xa8] sm:$0xff]
  %v144 = vld [vmem:[%s3 + $0xb0] sm:$0xff]
  %v145 = vld [vmem:[%s3 + $0xb8] sm:$0xff]
  %v146 = vld [vmem:[%s3 + $0xc0] sm:$0xff]
  %v147 = vld [vmem:[%s3 + $0xc8] sm:$0xff]
  %v148 = vld [vmem:[%s3 + $0xd0] sm:$0xff]
  %v149 = vld [vmem:[%s3 + $0xd8] sm:$0xff]
  %v150 = vld [vmem:[%s3 + $0xe0] sm:$0xff]
  %v151 = vld [vmem:[%s3 + $0xe8] sm:$0xff]
  %v152 = vld [vmem:[%s3 + $0xf0] sm:$0xff]
  %v153 = vld [vmem:[%s3 + $0xf8] sm:$0xff]
  %v154 = vld [vmem:[%s3 + $0x100] sm:$0xff]
  %v155 = vld [vmem:[%s3 + $0x108] sm:$0xff]
  %v156 = vld [vmem:[%s3 + $0x110] sm:$0xff]
  %v157 = vld [vmem:[%s3 + $0x118] sm:$0xff]
  %v158 = vld [vmem:[%s3 + $0x120] sm:$0xff]
  %v159 = vld [vmem:[%s3 + $0x128] sm:$0xff]
  %v160 = vld [vmem:[%s3 + $0x130] sm:$0xff]
  %v161 = vld [vmem:[%s3 + $0x138] sm:$0xff]
  %v162 = vld [vmem:[%s3 + $0x140] sm:$0xff]
  %v163 = vld [vmem:[%s3 + $0x148] sm:$0xff]
  %v164 = vld [vmem:[%s3 + $0x150] sm:$0xff]
  %v165 = vld [vmem:[%s3 + $0x158] sm:$0xff]
  %v166 = vld [vmem:[%s3 + $0x160] sm:$0xff]
  %v167 = vld [vmem:[%s3 + $0x168] sm:$0xff]
  %v168 = vld [vmem:[%s3 + $0x170] sm:$0xff]
  %v169 = vld [vmem:[%s3 + $0x178] sm:$0xff]
  %v170 = vld [vmem:[%s3 + $0x180] sm:$0xff]
  %v171 = vld [vmem:[%s3 + $0x188] sm:$0xff]
  %v172 = vld [vmem:[%s3 + $0x190] sm:$0xff]
  %v173 = vld [vmem:[%s3 + $0x198] sm:$0xff]
  %v174 = vld [vmem:[%s3 + $0x1a0] sm:$0xff]
  %v175 = vld [vmem:[%s3 + $0x1a8] sm:$0xff]
  %v176 = vld [vmem:[%s3 + $0x1b0] sm:$0xff]
  %v177 = vld [vmem:[%s3 + $0x1b8] sm:$0xff]
  %v178 = vld [vmem:[%s3 + $0x1c0] sm:$0xff]
  %v179 = vld [vmem:[%s3 + $0x1c8] sm:$0xff]
  %v180 = vld [vmem:[%s3 + $0x1d0] sm:$0xff]
  %v181 = vld [vmem:[%s3 + $0x1d8] sm:$0xff]
  %v182 = vld [vmem:[%s3 + $0x1e0] sm:$0xff]
  %v183 = vld [vmem:[%s3 + $0x1e8] sm:$0xff]
  %v184 = vld [vmem:[%s3 + $0x1f0] sm:$0xff]
  %v185 = vld [vmem:[%s3 + $0x1f8] sm:$0xff]
  %v186 = vld [vmem:[%s4] sm:$0x3]
  %v188 = vlaneseq
  %v189 = vshrl.u32 %v188, 7
  %v190 = vsub.s32 0, %v189
  %v191 = vrot.slane %v186, %v190
  %v192 = vlaneseq
  %v193 = vshrl.u32 %v192, 7
  %v194 = vsub.s32 1, %v193
  %v195 = vrot.slane %v186, %v194
  %198 = vmatprep.subr.mxu0 %v123
  %199 = vmatpush1.msra.mxu0 %v122
  %200 = vmatprep.subr.mxu0 %v125
  %201 = vmatpush1.msra.mxu0 %v124
  %202 = vmatprep.subr.mxu0 %v127
  %203 = vmatpush1.msra.mxu0 %v126
  %204 = vmatprep.subr.mxu0 %v129
  %205 = vmatpush1.msra.mxu0 %v128
  %206 = vmatprep.subr.mxu0 %v131
  %207 = vmatpush1.msra.mxu0 %v130
  %208 = vmatprep.subr.mxu0 %v133
  %209 = vmatpush1.msra.mxu0 %v132
  %210 = vmatprep.subr.mxu0 %v135
  %211 = vmatpush1.msra.mxu0 %v134
  %212 = vmatprep.subr.mxu0 %v137
  %213 = vmatpush1.msra.mxu0 %v136
  %214 = vmatprep.subr.mxu0 %v139
  %215 = vmatpush1.msra.mxu0 %v138
  %216 = vmatprep.subr.mxu0 %v141
  %217 = vmatpush1.msra.mxu0 %v140
  %218 = vmatprep.subr.mxu0 %v143
  %219 = vmatpush1.msra.mxu0 %v142
  %220 = vmatprep.subr.mxu0 %v145
  %221 = vmatpush1.msra.mxu0 %v144
  %222 = vmatprep.subr.mxu0 %v147
  %223 = vmatpush1.msra.mxu0 %v146
  %224 = vmatprep.subr.mxu0 %v149
  %225 = vmatpush1.msra.mxu0 %v148
  %226 = vmatprep.subr.mxu0 %v151
  %227 = vmatpush1.msra.mxu0 %v150
  %228 = vmatprep.subr.mxu0 %v153
  %229 = vmatpush1.msra.mxu0 %v152
  %230 = vmatprep.subr.mxu0 %v155
  %231 = vmatpush1.msra.mxu0 %v154
  %232 = vmatprep.subr.mxu0 %v157
  %233 = vmatpush1.msra.mxu0 %v156
  %234 = vmatprep.subr.mxu0 %v159
  %235 = vmatpush1.msra.mxu0 %v158
  %236 = vmatprep.subr.mxu0 %v161
  %237 = vmatpush1.msra.mxu0 %v160
  %238 = vmatprep.subr.mxu0 %v163
  %239 = vmatpush1.msra.mxu0 %v162
  %240 = vmatprep.subr.mxu0 %v165
  %241 = vmatpush1.msra.mxu0 %v164
  %242 = vmatprep.subr.mxu0 %v167
  %243 = vmatpush1.msra.mxu0 %v166
  %244 = vmatprep.subr.mxu0 %v169
  %245 = vmatpush1.msra.mxu0 %v168
  %246 = vmatprep.subr.mxu0 %v171
  %247 = vmatpush1.msra.mxu0 %v170
  %248 = vmatprep.subr.mxu0 %v173
  %249 = vmatpush1.msra.mxu0 %v172
  %250 = vmatprep.subr.mxu0 %v175
  %251 = vmatpush1.msra.mxu0 %v174
  %252 = vmatprep.subr.mxu0 %v177
  %253 = vmatpush1.msra.mxu0 %v176
  %254 = vmatprep.subr.mxu0 %v179
  %255 = vmatpush1.msra.mxu0 %v178
  %256 = vmatprep.subr.mxu0 %v181
  %257 = vmatpush1.msra.mxu0 %v180
  %258 = vmatprep.subr.mxu0 %v183
  %259 = vmatpush1.msra.mxu0 %v182
  %260 = vmatprep.subr.mxu0 %v185
  %261 = vmatpush1.msra.mxu0 %v184
  %262 = vmatprep.mubr.f32.mxu0 %v120
  %263 = vmatmul.mubr.f32.gmra.mrb[0].mxu0 %v118
  %v264 = vpop.f32.mrb[0].mxu0
  %v265 = vadd.f32 %v191, %v264
  %v266 = vpop.f32.mrb[0].mxu0
  %v267 = vadd.f32 %v195, %v266
  %268 = vdwg.mxu0
  %v269 = vmul.f32 %v265, %v265
  %v270 = vmul.f32 %v267, %v267
  %v271 = vmul.f32 %v269, %v265
  %v272 = vmul.f32 %v270, %v267
  %v273 = vmax.f32 %v271, 0.0
  %v274 = vmax.f32 %v272, 0.0
  %v275 = vld [vmem:[%s5] sm:$0xff]
  %v276 = vld [vmem:[%s5 + $0x8] sm:$0xff]
  %v277 = vld [vmem:[%s5 + $0x10] sm:$0xff]
  %v278 = vld [vmem:[%s5 + $0x18] sm:$0xff]
  %v279 = vld [vmem:[%s5 + $0x20] sm:$0xff]
  %v280 = vld [vmem:[%s5 + $0x28] sm:$0xff]
  %v281 = vld [vmem:[%s5 + $0x30] sm:$0xff]
  %v282 = vld [vmem:[%s5 + $0x38] sm:$0xff]
  %v283 = vld [vmem:[%s5 + $0x40] sm:$0xff]
  %v284 = vld [vmem:[%s5 + $0x48] sm:$0xff]
  %v285 = vld [vmem:[%s5 + $0x50] sm:$0xff]
  %v286 = vld [vmem:[%s5 + $0x58] sm:$0xff]
  %v287 = vld [vmem:[%s5 + $0x60] sm:$0xff]
  %v288 = vld [vmem:[%s5 + $0x68] sm:$0xff]
  %v289 = vld [vmem:[%s5 + $0x70] sm:$0xff]
  %v290 = vld [vmem:[%s5 + $0x78] sm:$0xff]
  %v291 = vld [vmem:[%s5 + $0x80] sm:$0xff]
  %v292 = vld [vmem:[%s5 + $0x88] sm:$0xff]
  %v293 = vld [vmem:[%s5 + $0x90] sm:$0xff]
  %v294 = vld [vmem:[%s5 + $0x98] sm:$0xff]
  %v295 = vld [vmem:[%s5 + $0xa0] sm:$0xff]
  %v296 = vld [vmem:[%s5 + $0xa8] sm:$0xff]
  %v297 = vld [vmem:[%s5 + $0xb0] sm:$0xff]
  %v298 = vld [vmem:[%s5 + $0xb8] sm:$0xff]
  %v299 = vld [vmem:[%s5 + $0xc0] sm:$0xff]
  %v300 = vld [vmem:[%s5 + $0xc8] sm:$0xff]
  %v301 = vld [vmem:[%s5 + $0xd0] sm:$0xff]
  %v302 = vld [vmem:[%s5 + $0xd8] sm:$0xff]
  %v303 = vld [vmem:[%s5 + $0xe0] sm:$0xff]
  %v304 = vld [vmem:[%s5 + $0xe8] sm:$0xff]
  %v305 = vld [vmem:[%s5 + $0xf0] sm:$0xff]
  %v306 = vld [vmem:[%s5 + $0xf8] sm:$0xff]
  %v307 = vld [vmem:[%s5 + $0x100] sm:$0xff]
  %v308 = vld [vmem:[%s5 + $0x108] sm:$0xff]
  %v309 = vld [vmem:[%s5 + $0x110] sm:$0xff]
  %v310 = vld [vmem:[%s5 + $0x118] sm:$0xff]
  %v311 = vld [vmem:[%s5 + $0x120] sm:$0xff]
  %v312 = vld [vmem:[%s5 + $0x128] sm:$0xff]
  %v313 = vld [vmem:[%s5 + $0x130] sm:$0xff]
  %v314 = vld [vmem:[%s5 + $0x138] sm:$0xff]
  %v315 = vld [vmem:[%s5 + $0x140] sm:$0xff]
  %v316 = vld [vmem:[%s5 + $0x148] sm:$0xff]
  %v317 = vld [vmem:[%s5 + $0x150] sm:$0xff]
  %v318 = vld [vmem:[%s5 + $0x158] sm:$0xff]
  %v319 = vld [vmem:[%s5 + $0x160] sm:$0xff]
  %v320 = vld [vmem:[%s5 + $0x168] sm:$0xff]
  %v321 = vld [vmem:[%s5 + $0x170] sm:$0xff]
  %v322 = vld [vmem:[%s5 + $0x178] sm:$0xff]
  %v323 = vld [vmem:[%s5 + $0x180] sm:$0xff]
  %v324 = vld [vmem:[%s5 + $0x188] sm:$0xff]
  %v325 = vld [vmem:[%s5 + $0x190] sm:$0xff]
  %v326 = vld [vmem:[%s5 + $0x198] sm:$0xff]
  %v327 = vld [vmem:[%s5 + $0x1a0] sm:$0xff]
  %v328 = vld [vmem:[%s5 + $0x1a8] sm:$0xff]
  %v329 = vld [vmem:[%s5 + $0x1b0] sm:$0xff]
  %v330 = vld [vmem:[%s5 + $0x1b8] sm:$0xff]
  %v331 = vld [vmem:[%s5 + $0x1c0] sm:$0xff]
  %v332 = vld [vmem:[%s5 + $0x1c8] sm:$0xff]
  %v333 = vld [vmem:[%s5 + $0x1d0] sm:$0xff]
  %v334 = vld [vmem:[%s5 + $0x1d8] sm:$0xff]
  %v335 = vld [vmem:[%s5 + $0x1e0] sm:$0xff]
  %v336 = vld [vmem:[%s5 + $0x1e8] sm:$0xff]
  %v337 = vld [vmem:[%s5 + $0x1f0] sm:$0xff]
  %v338 = vld [vmem:[%s5 + $0x1f8] sm:$0xff]
  %v339 = vld [vmem:[%s6] sm:$0x3]
  %v341 = vlaneseq
  %v342 = vshrl.u32 %v341, 7
  %v343 = vsub.s32 0, %v342
  %v344 = vrot.slane %v339, %v343
  %v345 = vlaneseq
  %v346 = vshrl.u32 %v345, 7
  %v347 = vsub.s32 1, %v346
  %v348 = vrot.slane %v339, %v347
  %351 = vmatprep.subr.mxu0 %v276
  %352 = vmatpush1.msra.mxu0 %v275
  %353 = vmatprep.subr.mxu0 %v278
  %354 = vmatpush1.msra.mxu0 %v277
  %355 = vmatprep.subr.mxu0 %v280
  %356 = vmatpush1.msra.mxu0 %v279
  %357 = vmatprep.subr.mxu0 %v282
  %358 = vmatpush1.msra.mxu0 %v281
  %359 = vmatprep.subr.mxu0 %v284
  %360 = vmatpush1.msra.mxu0 %v283
  %361 = vmatprep.subr.mxu0 %v286
  %362 = vmatpush1.msra.mxu0 %v285
  %363 = vmatprep.subr.mxu0 %v288
  %364 = vmatpush1.msra.mxu0 %v287
  %365 = vmatprep.subr.mxu0 %v290
  %366 = vmatpush1.msra.mxu0 %v289
  %367 = vmatprep.subr.mxu0 %v292
  %368 = vmatpush1.msra.mxu0 %v291
  %369 = vmatprep.subr.mxu0 %v294
  %370 = vmatpush1.msra.mxu0 %v293
  %371 = vmatprep.subr.mxu0 %v296
  %372 = vmatpush1.msra.mxu0 %v295
  %373 = vmatprep.subr.mxu0 %v298
  %374 = vmatpush1.msra.mxu0 %v297
  %375 = vmatprep.subr.mxu0 %v300
  %376 = vmatpush1.msra.mxu0 %v299
  %377 = vmatprep.subr.mxu0 %v302
  %378 = vmatpush1.msra.mxu0 %v301
  %379 = vmatprep.subr.mxu0 %v304
  %380 = vmatpush1.msra.mxu0 %v303
  %381 = vmatprep.subr.mxu0 %v306
  %382 = vmatpush1.msra.mxu0 %v305
  %383 = vmatprep.subr.mxu0 %v308
  %384 = vmatpush1.msra.mxu0 %v307
  %385 = vmatprep.subr.mxu0 %v310
  %386 = vmatpush1.msra.mxu0 %v309
  %387 = vmatprep.subr.mxu0 %v312
  %388 = vmatpush1.msra.mxu0 %v311
  %389 = vmatprep.subr.mxu0 %v314
  %390 = vmatpush1.msra.mxu0 %v313
  %391 = vmatprep.subr.mxu0 %v316
  %392 = vmatpush1.msra.mxu0 %v315
  %393 = vmatprep.subr.mxu0 %v318
  %394 = vmatpush1.msra.mxu0 %v317
  %395 = vmatprep.subr.mxu0 %v320
  %396 = vmatpush1.msra.mxu0 %v319
  %397 = vmatprep.subr.mxu0 %v322
  %398 = vmatpush1.msra.mxu0 %v321
  %399 = vmatprep.subr.mxu0 %v324
  %400 = vmatpush1.msra.mxu0 %v323
  %401 = vmatprep.subr.mxu0 %v326
  %402 = vmatpush1.msra.mxu0 %v325
  %403 = vmatprep.subr.mxu0 %v328
  %404 = vmatpush1.msra.mxu0 %v327
  %405 = vmatprep.subr.mxu0 %v330
  %406 = vmatpush1.msra.mxu0 %v329
  %407 = vmatprep.subr.mxu0 %v332
  %408 = vmatpush1.msra.mxu0 %v331
  %409 = vmatprep.subr.mxu0 %v334
  %410 = vmatpush1.msra.mxu0 %v333
  %411 = vmatprep.subr.mxu0 %v336
  %412 = vmatpush1.msra.mxu0 %v335
  %413 = vmatprep.subr.mxu0 %v338
  %414 = vmatpush1.msra.mxu0 %v337
  %415 = vmatprep.mubr.f32.mxu0 %v274
  %416 = vmatmul.mubr.f32.gmra.mrb[0].mxu0 %v273
  %v417 = vpop.f32.mrb[0].mxu0
  %v418 = vadd.f32 %v344, %v417
  %v419 = vpop.f32.mrb[0].mxu0
  %v420 = vadd.f32 %v348, %v419
  %421 = vdwg.mxu0
  %v422 = vmul.f32 %v418, %v418
  %v423 = vmul.f32 %v420, %v420
  %v424 = vmul.f32 %v422, %v418
  %v425 = vmul.f32 %v423, %v420
  %v426 = vmax.f32 %v424, 0.0
  %v427 = vmax.f32 %v425, 0.0
  %v428 = vadd.f32 %v426, %v118
  %v429 = vadd.f32 %v427, %v120
  %s430 = scalar_lea.vmem %s3, 512
  %v431 = vld [vmem:[%s430] sm:$0xff]
  %v432 = vld [vmem:[%s430 + $0x8] sm:$0xff]
  %v433 = vld [vmem:[%s430 + $0x10] sm:$0xff]
  %v434 = vld [vmem:[%s430 + $0x18] sm:$0xff]
  %v435 = vld [vmem:[%s430 + $0x20] sm:$0xff]
  %v436 = vld [vmem:[%s430 + $0x28] sm:$0xff]
  %v437 = vld [vmem:[%s430 + $0x30] sm:$0xff]
  %v438 = vld [vmem:[%s430 + $0x38] sm:$0xff]
  %v439 = vld [vmem:[%s430 + $0x40] sm:$0xff]
  %v440 = vld [vmem:[%s430 + $0x48] sm:$0xff]
  %v441 = vld [vmem:[%s430 + $0x50] sm:$0xff]
  %v442 = vld [vmem:[%s430 + $0x58] sm:$0xff]
  %v443 = vld [vmem:[%s430 + $0x60] sm:$0xff]
  %v444 = vld [vmem:[%s430 + $0x68] sm:$0xff]
  %v445 = vld [vmem:[%s430 + $0x70] sm:$0xff]
  %v446 = vld [vmem:[%s430 + $0x78] sm:$0xff]
  %v447 = vld [vmem:[%s430 + $0x80] sm:$0xff]
  %v448 = vld [vmem:[%s430 + $0x88] sm:$0xff]
  %v449 = vld [vmem:[%s430 + $0x90] sm:$0xff]
  %v450 = vld [vmem:[%s430 + $0x98] sm:$0xff]
  %v451 = vld [vmem:[%s430 + $0xa0] sm:$0xff]
  %v452 = vld [vmem:[%s430 + $0xa8] sm:$0xff]
  %v453 = vld [vmem:[%s430 + $0xb0] sm:$0xff]
  %v454 = vld [vmem:[%s430 + $0xb8] sm:$0xff]
  %v455 = vld [vmem:[%s430 + $0xc0] sm:$0xff]
  %v456 = vld [vmem:[%s430 + $0xc8] sm:$0xff]
  %v457 = vld [vmem:[%s430 + $0xd0] sm:$0xff]
  %v458 = vld [vmem:[%s430 + $0xd8] sm:$0xff]
  %v459 = vld [vmem:[%s430 + $0xe0] sm:$0xff]
  %v460 = vld [vmem:[%s430 + $0xe8] sm:$0xff]
  %v461 = vld [vmem:[%s430 + $0xf0] sm:$0xff]
  %v462 = vld [vmem:[%s430 + $0xf8] sm:$0xff]
  %v463 = vld [vmem:[%s430 + $0x100] sm:$0xff]
  %v464 = vld [vmem:[%s430 + $0x108] sm:$0xff]
  %v465 = vld [vmem:[%s430 + $0x110] sm:$0xff]
  %v466 = vld [vmem:[%s430 + $0x118] sm:$0xff]
  %v467 = vld [vmem:[%s430 + $0x120] sm:$0xff]
  %v468 = vld [vmem:[%s430 + $0x128] sm:$0xff]
  %v469 = vld [vmem:[%s430 + $0x130] sm:$0xff]
  %v470 = vld [vmem:[%s430 + $0x138] sm:$0xff]
  %v471 = vld [vmem:[%s430 + $0x140] sm:$0xff]
  %v472 = vld [vmem:[%s430 + $0x148] sm:$0xff]
  %v473 = vld [vmem:[%s430 + $0x150] sm:$0xff]
  %v474 = vld [vmem:[%s430 + $0x158] sm:$0xff]
  %v475 = vld [vmem:[%s430 + $0x160] sm:$0xff]
  %v476 = vld [vmem:[%s430 + $0x168] sm:$0xff]
  %v477 = vld [vmem:[%s430 + $0x170] sm:$0xff]
  %v478 = vld [vmem:[%s430 + $0x178] sm:$0xff]
  %v479 = vld [vmem:[%s430 + $0x180] sm:$0xff]
  %v480 = vld [vmem:[%s430 + $0x188] sm:$0xff]
  %v481 = vld [vmem:[%s430 + $0x190] sm:$0xff]
  %v482 = vld [vmem:[%s430 + $0x198] sm:$0xff]
  %v483 = vld [vmem:[%s430 + $0x1a0] sm:$0xff]
  %v484 = vld [vmem:[%s430 + $0x1a8] sm:$0xff]
  %v485 = vld [vmem:[%s430 + $0x1b0] sm:$0xff]
  %v486 = vld [vmem:[%s430 + $0x1b8] sm:$0xff]
  %v487 = vld [vmem:[%s430 + $0x1c0] sm:$0xff]
  %v488 = vld [vmem:[%s430 + $0x1c8] sm:$0xff]
  %v489 = vld [vmem:[%s430 + $0x1d0] sm:$0xff]
  %v490 = vld [vmem:[%s430 + $0x1d8] sm:$0xff]
  %v491 = vld [vmem:[%s430 + $0x1e0] sm:$0xff]
  %v492 = vld [vmem:[%s430 + $0x1e8] sm:$0xff]
  %v493 = vld [vmem:[%s430 + $0x1f0] sm:$0xff]
  %v494 = vld [vmem:[%s430 + $0x1f8] sm:$0xff]
  %s495 = scalar_lea.vmem %s4, 2
  %v496 = vld [vmem:[%s495] sm:$0x3]
  %v498 = vlaneseq
  %v499 = vshrl.u32 %v498, 7
  %v500 = vsub.s32 0, %v499
  %v501 = vrot.slane %v496, %v500
  %v502 = vlaneseq
  %v503 = vshrl.u32 %v502, 7
  %v504 = vsub.s32 1, %v503
  %v505 = vrot.slane %v496, %v504
  %508 = vmatprep.subr.mxu0 %v432
  %509 = vmatpush1.msra.mxu0 %v431
  %510 = vmatprep.subr.mxu0 %v434
  %511 = vmatpush1.msra.mxu0 %v433
  %512 = vmatprep.subr.mxu0 %v436
  %513 = vmatpush1.msra.mxu0 %v435
  %514 = vmatprep.subr.mxu0 %v438
  %515 = vmatpush1.msra.mxu0 %v437
  %516 = vmatprep.subr.mxu0 %v440
  %517 = vmatpush1.msra.mxu0 %v439
  %518 = vmatprep.subr.mxu0 %v442
  %519 = vmatpush1.msra.mxu0 %v441
  %520 = vmatprep.subr.mxu0 %v444
  %521 = vmatpush1.msra.mxu0 %v443
  %522 = vmatprep.subr.mxu0 %v446
  %523 = vmatpush1.msra.mxu0 %v445
  %524 = vmatprep.subr.mxu0 %v448
  %525 = vmatpush1.msra.mxu0 %v447
  %526 = vmatprep.subr.mxu0 %v450
  %527 = vmatpush1.msra.mxu0 %v449
  %528 = vmatprep.subr.mxu0 %v452
  %529 = vmatpush1.msra.mxu0 %v451
  %530 = vmatprep.subr.mxu0 %v454
  %531 = vmatpush1.msra.mxu0 %v453
  %532 = vmatprep.subr.mxu0 %v456
  %533 = vmatpush1.msra.mxu0 %v455
  %534 = vmatprep.subr.mxu0 %v458
  %535 = vmatpush1.msra.mxu0 %v457
  %536 = vmatprep.subr.mxu0 %v460
  %537 = vmatpush1.msra.mxu0 %v459
  %538 = vmatprep.subr.mxu0 %v462
  %539 = vmatpush1.msra.mxu0 %v461
  %540 = vmatprep.subr.mxu0 %v464
  %541 = vmatpush1.msra.mxu0 %v463
  %542 = vmatprep.subr.mxu0 %v466
  %543 = vmatpush1.msra.mxu0 %v465
  %544 = vmatprep.subr.mxu0 %v468
  %545 = vmatpush1.msra.mxu0 %v467
  %546 = vmatprep.subr.mxu0 %v470
  %547 = vmatpush1.msra.mxu0 %v469
  %548 = vmatprep.subr.mxu0 %v472
  %549 = vmatpush1.msra.mxu0 %v471
  %550 = vmatprep.subr.mxu0 %v474
  %551 = vmatpush1.msra.mxu0 %v473
  %552 = vmatprep.subr.mxu0 %v476
  %553 = vmatpush1.msra.mxu0 %v475
  %554 = vmatprep.subr.mxu0 %v478
  %555 = vmatpush1.msra.mxu0 %v477
  %556 = vmatprep.subr.mxu0 %v480
  %557 = vmatpush1.msra.mxu0 %v479
  %558 = vmatprep.subr.mxu0 %v482
  %559 = vmatpush1.msra.mxu0 %v481
  %560 = vmatprep.subr.mxu0 %v484
  %561 = vmatpush1.msra.mxu0 %v483
  %562 = vmatprep.subr.mxu0 %v486
  %563 = vmatpush1.msra.mxu0 %v485
  %564 = vmatprep.subr.mxu0 %v488
  %565 = vmatpush1.msra.mxu0 %v487
  %566 = vmatprep.subr.mxu0 %v490
  %567 = vmatpush1.msra.mxu0 %v489
  %568 = vmatprep.subr.mxu0 %v492
  %569 = vmatpush1.msra.mxu0 %v491
  %570 = vmatprep.subr.mxu0 %v494
  %571 = vmatpush1.msra.mxu0 %v493
  %572 = vmatprep.mubr.f32.mxu0 %v429
  %573 = vmatmul.mubr.f32.gmra.mrb[0].mxu0 %v428
  %v574 = vpop.f32.mrb[0].mxu0
  %v575 = vadd.f32 %v501, %v574
  %v576 = vpop.f32.mrb[0].mxu0
  %v577 = vadd.f32 %v505, %v576
  %578 = vdwg.mxu0
  %v579 = vmul.f32 %v575, %v575
  %v580 = vmul.f32 %v577, %v577
  %v581 = vmul.f32 %v579, %v575
  %v582 = vmul.f32 %v580, %v577
  %v583 = vmax.f32 %v581, 0.0
  %v584 = vmax.f32 %v582, 0.0
  %s585 = scalar_lea.vmem %s5, 512
  %v586 = vld [vmem:[%s585] sm:$0xff]
  %v587 = vld [vmem:[%s585 + $0x8] sm:$0xff]
  %v588 = vld [vmem:[%s585 + $0x10] sm:$0xff]
  %v589 = vld [vmem:[%s585 + $0x18] sm:$0xff]
  %v590 = vld [vmem:[%s585 + $0x20] sm:$0xff]
  %v591 = vld [vmem:[%s585 + $0x28] sm:$0xff]
  %v592 = vld [vmem:[%s585 + $0x30] sm:$0xff]
  %v593 = vld [vmem:[%s585 + $0x38] sm:$0xff]
  %v594 = vld [vmem:[%s585 + $0x40] sm:$0xff]
  %v595 = vld [vmem:[%s585 + $0x48] sm:$0xff]
  %v596 = vld [vmem:[%s585 + $0x50] sm:$0xff]
  %v597 = vld [vmem:[%s585 + $0x58] sm:$0xff]
  %v598 = vld [vmem:[%s585 + $0x60] sm:$0xff]
  %v599 = vld [vmem:[%s585 + $0x68] sm:$0xff]
  %v600 = vld [vmem:[%s585 + $0x70] sm:$0xff]
  %v601 = vld [vmem:[%s585 + $0x78] sm:$0xff]
  %v602 = vld [vmem:[%s585 + $0x80] sm:$0xff]
  %v603 = vld [vmem:[%s585 + $0x88] sm:$0xff]
  %v604 = vld [vmem:[%s585 + $0x90] sm:$0xff]
  %v605 = vld [vmem:[%s585 + $0x98] sm:$0xff]
  %v606 = vld [vmem:[%s585 + $0xa0] sm:$0xff]
  %v607 = vld [vmem:[%s585 + $0xa8] sm:$0xff]
  %v608 = vld [vmem:[%s585 + $0xb0] sm:$0xff]
  %v609 = vld [vmem:[%s585 + $0xb8] sm:$0xff]
  %v610 = vld [vmem:[%s585 + $0xc0] sm:$0xff]
  %v611 = vld [vmem:[%s585 + $0xc8] sm:$0xff]
  %v612 = vld [vmem:[%s585 + $0xd0] sm:$0xff]
  %v613 = vld [vmem:[%s585 + $0xd8] sm:$0xff]
  %v614 = vld [vmem:[%s585 + $0xe0] sm:$0xff]
  %v615 = vld [vmem:[%s585 + $0xe8] sm:$0xff]
  %v616 = vld [vmem:[%s585 + $0xf0] sm:$0xff]
  %v617 = vld [vmem:[%s585 + $0xf8] sm:$0xff]
  %v618 = vld [vmem:[%s585 + $0x100] sm:$0xff]
  %v619 = vld [vmem:[%s585 + $0x108] sm:$0xff]
  %v620 = vld [vmem:[%s585 + $0x110] sm:$0xff]
  %v621 = vld [vmem:[%s585 + $0x118] sm:$0xff]
  %v622 = vld [vmem:[%s585 + $0x120] sm:$0xff]
  %v623 = vld [vmem:[%s585 + $0x128] sm:$0xff]
  %v624 = vld [vmem:[%s585 + $0x130] sm:$0xff]
  %v625 = vld [vmem:[%s585 + $0x138] sm:$0xff]
  %v626 = vld [vmem:[%s585 + $0x140] sm:$0xff]
  %v627 = vld [vmem:[%s585 + $0x148] sm:$0xff]
  %v628 = vld [vmem:[%s585 + $0x150] sm:$0xff]
  %v629 = vld [vmem:[%s585 + $0x158] sm:$0xff]
  %v630 = vld [vmem:[%s585 + $0x160] sm:$0xff]
  %v631 = vld [vmem:[%s585 + $0x168] sm:$0xff]
  %v632 = vld [vmem:[%s585 + $0x170] sm:$0xff]
  %v633 = vld [vmem:[%s585 + $0x178] sm:$0xff]
  %v634 = vld [vmem:[%s585 + $0x180] sm:$0xff]
  %v635 = vld [vmem:[%s585 + $0x188] sm:$0xff]
  %v636 = vld [vmem:[%s585 + $0x190] sm:$0xff]
  %v637 = vld [vmem:[%s585 + $0x198] sm:$0xff]
  %v638 = vld [vmem:[%s585 + $0x1a0] sm:$0xff]
  %v639 = vld [vmem:[%s585 + $0x1a8] sm:$0xff]
  %v640 = vld [vmem:[%s585 + $0x1b0] sm:$0xff]
  %v641 = vld [vmem:[%s585 + $0x1b8] sm:$0xff]
  %v642 = vld [vmem:[%s585 + $0x1c0] sm:$0xff]
  %v643 = vld [vmem:[%s585 + $0x1c8] sm:$0xff]
  %v644 = vld [vmem:[%s585 + $0x1d0] sm:$0xff]
  %v645 = vld [vmem:[%s585 + $0x1d8] sm:$0xff]
  %v646 = vld [vmem:[%s585 + $0x1e0] sm:$0xff]
  %v647 = vld [vmem:[%s585 + $0x1e8] sm:$0xff]
  %v648 = vld [vmem:[%s585 + $0x1f0] sm:$0xff]
  %v649 = vld [vmem:[%s585 + $0x1f8] sm:$0xff]
  %s650 = scalar_lea.vmem %s6, 2
  %v651 = vld [vmem:[%s650] sm:$0x3]
  %v653 = vlaneseq
  %v654 = vshrl.u32 %v653, 7
  %v655 = vsub.s32 0, %v654
  %v656 = vrot.slane %v651, %v655
  %v657 = vlaneseq
  %v658 = vshrl.u32 %v657, 7
  %v659 = vsub.s32 1, %v658
  %v660 = vrot.slane %v651, %v659
  %663 = vmatprep.subr.mxu0 %v587
  %664 = vmatpush1.msra.mxu0 %v586
  %665 = vmatprep.subr.mxu0 %v589
  %666 = vmatpush1.msra.mxu0 %v588
  %667 = vmatprep.subr.mxu0 %v591
  %668 = vmatpush1.msra.mxu0 %v590
  %669 = vmatprep.subr.mxu0 %v593
  %670 = vmatpush1.msra.mxu0 %v592
  %671 = vmatprep.subr.mxu0 %v595
  %672 = vmatpush1.msra.mxu0 %v594
  %673 = vmatprep.subr.mxu0 %v597
  %674 = vmatpush1.msra.mxu0 %v596
  %675 = vmatprep.subr.mxu0 %v599
  %676 = vmatpush1.msra.mxu0 %v598
  %677 = vmatprep.subr.mxu0 %v601
  %678 = vmatpush1.msra.mxu0 %v600
  %679 = vmatprep.subr.mxu0 %v603
  %680 = vmatpush1.msra.mxu0 %v602
  %681 = vmatprep.subr.mxu0 %v605
  %682 = vmatpush1.msra.mxu0 %v604
  %683 = vmatprep.subr.mxu0 %v607
  %684 = vmatpush1.msra.mxu0 %v606
  %685 = vmatprep.subr.mxu0 %v609
  %686 = vmatpush1.msra.mxu0 %v608
  %687 = vmatprep.subr.mxu0 %v611
  %688 = vmatpush1.msra.mxu0 %v610
  %689 = vmatprep.subr.mxu0 %v613
  %690 = vmatpush1.msra.mxu0 %v612
  %691 = vmatprep.subr.mxu0 %v615
  %692 = vmatpush1.msra.mxu0 %v614
  %693 = vmatprep.subr.mxu0 %v617
  %694 = vmatpush1.msra.mxu0 %v616
  %695 = vmatprep.subr.mxu0 %v619
  %696 = vmatpush1.msra.mxu0 %v618
  %697 = vmatprep.subr.mxu0 %v621
  %698 = vmatpush1.msra.mxu0 %v620
  %699 = vmatprep.subr.mxu0 %v623
  %700 = vmatpush1.msra.mxu0 %v622
  %701 = vmatprep.subr.mxu0 %v625
  %702 = vmatpush1.msra.mxu0 %v624
  %703 = vmatprep.subr.mxu0 %v627
  %704 = vmatpush1.msra.mxu0 %v626
  %705 = vmatprep.subr.mxu0 %v629
  %706 = vmatpush1.msra.mxu0 %v628
  %707 = vmatprep.subr.mxu0 %v631
  %708 = vmatpush1.msra.mxu0 %v630
  %709 = vmatprep.subr.mxu0 %v633
  %710 = vmatpush1.msra.mxu0 %v632
  %711 = vmatprep.subr.mxu0 %v635
  %712 = vmatpush1.msra.mxu0 %v634
  %713 = vmatprep.subr.mxu0 %v637
  %714 = vmatpush1.msra.mxu0 %v636
  %715 = vmatprep.subr.mxu0 %v639
  %716 = vmatpush1.msra.mxu0 %v638
  %717 = vmatprep.subr.mxu0 %v641
  %718 = vmatpush1.msra.mxu0 %v640
  %719 = vmatprep.subr.mxu0 %v643
  %720 = vmatpush1.msra.mxu0 %v642
  %721 = vmatprep.subr.mxu0 %v645
  %722 = vmatpush1.msra.mxu0 %v644
  %723 = vmatprep.subr.mxu0 %v647
  %724 = vmatpush1.msra.mxu0 %v646
  %725 = vmatprep.subr.mxu0 %v649
  %726 = vmatpush1.msra.mxu0 %v648
  %727 = vmatprep.mubr.f32.mxu0 %v584
  %728 = vmatmul.mubr.f32.gmra.mrb[0].mxu0 %v583
  %v729 = vpop.f32.mrb[0].mxu0
  %v730 = vadd.f32 %v656, %v729
  %v731 = vpop.f32.mrb[0].mxu0
  %v732 = vadd.f32 %v660, %v731
  %733 = vdwg.mxu0
  %v734 = vmul.f32 %v730, %v730
  %v735 = vmul.f32 %v732, %v732
  %v736 = vmul.f32 %v734, %v730
  %v737 = vmul.f32 %v735, %v732
  %v738 = vmax.f32 %v736, 0.0
  %v739 = vmax.f32 %v737, 0.0
  %v740 = vadd.f32 %v738, %v428
  %v741 = vadd.f32 %v739, %v429
  %s742 = scalar_lea.vmem %s3, 1024
  %v743 = vld [vmem:[%s742] sm:$0xff]
  %v744 = vld [vmem:[%s742 + $0x8] sm:$0xff]
  %v745 = vld [vmem:[%s742 + $0x10] sm:$0xff]
  %v746 = vld [vmem:[%s742 + $0x18] sm:$0xff]
  %v747 = vld [vmem:[%s742 + $0x20] sm:$0xff]
  %v748 = vld [vmem:[%s742 + $0x28] sm:$0xff]
  %v749 = vld [vmem:[%s742 + $0x30] sm:$0xff]
  %v750 = vld [vmem:[%s742 + $0x38] sm:$0xff]
  %v751 = vld [vmem:[%s742 + $0x40] sm:$0xff]
  %v752 = vld [vmem:[%s742 + $0x48] sm:$0xff]
  %v753 = vld [vmem:[%s742 + $0x50] sm:$0xff]
  %v754 = vld [vmem:[%s742 + $0x58] sm:$0xff]
  %v755 = vld [vmem:[%s742 + $0x60] sm:$0xff]
  %v756 = vld [vmem:[%s742 + $0x68] sm:$0xff]
  %v757 = vld [vmem:[%s742 + $0x70] sm:$0xff]
  %v758 = vld [vmem:[%s742 + $0x78] sm:$0xff]
  %v759 = vld [vmem:[%s742 + $0x80] sm:$0xff]
  %v760 = vld [vmem:[%s742 + $0x88] sm:$0xff]
  %v761 = vld [vmem:[%s742 + $0x90] sm:$0xff]
  %v762 = vld [vmem:[%s742 + $0x98] sm:$0xff]
  %v763 = vld [vmem:[%s742 + $0xa0] sm:$0xff]
  %v764 = vld [vmem:[%s742 + $0xa8] sm:$0xff]
  %v765 = vld [vmem:[%s742 + $0xb0] sm:$0xff]
  %v766 = vld [vmem:[%s742 + $0xb8] sm:$0xff]
  %v767 = vld [vmem:[%s742 + $0xc0] sm:$0xff]
  %v768 = vld [vmem:[%s742 + $0xc8] sm:$0xff]
  %v769 = vld [vmem:[%s742 + $0xd0] sm:$0xff]
  %v770 = vld [vmem:[%s742 + $0xd8] sm:$0xff]
  %v771 = vld [vmem:[%s742 + $0xe0] sm:$0xff]
  %v772 = vld [vmem:[%s742 + $0xe8] sm:$0xff]
  %v773 = vld [vmem:[%s742 + $0xf0] sm:$0xff]
  %v774 = vld [vmem:[%s742 + $0xf8] sm:$0xff]
  %v775 = vld [vmem:[%s742 + $0x100] sm:$0xff]
  %v776 = vld [vmem:[%s742 + $0x108] sm:$0xff]
  %v777 = vld [vmem:[%s742 + $0x110] sm:$0xff]
  %v778 = vld [vmem:[%s742 + $0x118] sm:$0xff]
  %v779 = vld [vmem:[%s742 + $0x120] sm:$0xff]
  %v780 = vld [vmem:[%s742 + $0x128] sm:$0xff]
  %v781 = vld [vmem:[%s742 + $0x130] sm:$0xff]
  %v782 = vld [vmem:[%s742 + $0x138] sm:$0xff]
  %v783 = vld [vmem:[%s742 + $0x140] sm:$0xff]
  %v784 = vld [vmem:[%s742 + $0x148] sm:$0xff]
  %v785 = vld [vmem:[%s742 + $0x150] sm:$0xff]
  %v786 = vld [vmem:[%s742 + $0x158] sm:$0xff]
  %v787 = vld [vmem:[%s742 + $0x160] sm:$0xff]
  %v788 = vld [vmem:[%s742 + $0x168] sm:$0xff]
  %v789 = vld [vmem:[%s742 + $0x170] sm:$0xff]
  %v790 = vld [vmem:[%s742 + $0x178] sm:$0xff]
  %v791 = vld [vmem:[%s742 + $0x180] sm:$0xff]
  %v792 = vld [vmem:[%s742 + $0x188] sm:$0xff]
  %v793 = vld [vmem:[%s742 + $0x190] sm:$0xff]
  %v794 = vld [vmem:[%s742 + $0x198] sm:$0xff]
  %v795 = vld [vmem:[%s742 + $0x1a0] sm:$0xff]
  %v796 = vld [vmem:[%s742 + $0x1a8] sm:$0xff]
  %v797 = vld [vmem:[%s742 + $0x1b0] sm:$0xff]
  %v798 = vld [vmem:[%s742 + $0x1b8] sm:$0xff]
  %v799 = vld [vmem:[%s742 + $0x1c0] sm:$0xff]
  %v800 = vld [vmem:[%s742 + $0x1c8] sm:$0xff]
  %v801 = vld [vmem:[%s742 + $0x1d0] sm:$0xff]
  %v802 = vld [vmem:[%s742 + $0x1d8] sm:$0xff]
  %v803 = vld [vmem:[%s742 + $0x1e0] sm:$0xff]
  %v804 = vld [vmem:[%s742 + $0x1e8] sm:$0xff]
  %v805 = vld [vmem:[%s742 + $0x1f0] sm:$0xff]
  %v806 = vld [vmem:[%s742 + $0x1f8] sm:$0xff]
  %s807 = scalar_lea.vmem %s4, 4
  %v808 = vld [vmem:[%s807] sm:$0x3]
  %v810 = vlaneseq
  %v811 = vshrl.u32 %v810, 7
  %v812 = vsub.s32 0, %v811
  %v813 = vrot.slane %v808, %v812
  %v814 = vlaneseq
  %v815 = vshrl.u32 %v814, 7
  %v816 = vsub.s32 1, %v815
  %v817 = vrot.slane %v808, %v816
  %820 = vmatprep.subr.mxu0 %v744
  %821 = vmatpush1.msra.mxu0 %v743
  %822 = vmatprep.subr.mxu0 %v746
  %823 = vmatpush1.msra.mxu0 %v745
  %824 = vmatprep.subr.mxu0 %v748
  %825 = vmatpush1.msra.mxu0 %v747
  %826 = vmatprep.subr.mxu0 %v750
  %827 = vmatpush1.msra.mxu0 %v749
  %828 = vmatprep.subr.mxu0 %v752
  %829 = vmatpush1.msra.mxu0 %v751
  %830 = vmatprep.subr.mxu0 %v754
  %831 = vmatpush1.msra.mxu0 %v753
  %832 = vmatprep.subr.mxu0 %v756
  %833 = vmatpush1.msra.mxu0 %v755
  %834 = vmatprep.subr.mxu0 %v758
  %835 = vmatpush1.msra.mxu0 %v757
  %836 = vmatprep.subr.mxu0 %v760
  %837 = vmatpush1.msra.mxu0 %v759
  %838 = vmatprep.subr.mxu0 %v762
  %839 = vmatpush1.msra.mxu0 %v761
  %840 = vmatprep.subr.mxu0 %v764
  %841 = vmatpush1.msra.mxu0 %v763
  %842 = vmatprep.subr.mxu0 %v766
  %843 = vmatpush1.msra.mxu0 %v765
  %844 = vmatprep.subr.mxu0 %v768
  %845 = vmatpush1.msra.mxu0 %v767
  %846 = vmatprep.subr.mxu0 %v770
  %847 = vmatpush1.msra.mxu0 %v769
  %848 = vmatprep.subr.mxu0 %v772
  %849 = vmatpush1.msra.mxu0 %v771
  %850 = vmatprep.subr.mxu0 %v774
  %851 = vmatpush1.msra.mxu0 %v773
  %852 = vmatprep.subr.mxu0 %v776
  %853 = vmatpush1.msra.mxu0 %v775
  %854 = vmatprep.subr.mxu0 %v778
  %855 = vmatpush1.msra.mxu0 %v777
  %856 = vmatprep.subr.mxu0 %v780
  %857 = vmatpush1.msra.mxu0 %v779
  %858 = vmatprep.subr.mxu0 %v782
  %859 = vmatpush1.msra.mxu0 %v781
  %860 = vmatprep.subr.mxu0 %v784
  %861 = vmatpush1.msra.mxu0 %v783
  %862 = vmatprep.subr.mxu0 %v786
  %863 = vmatpush1.msra.mxu0 %v785
  %864 = vmatprep.subr.mxu0 %v788
  %865 = vmatpush1.msra.mxu0 %v787
  %866 = vmatprep.subr.mxu0 %v790
  %867 = vmatpush1.msra.mxu0 %v789
  %868 = vmatprep.subr.mxu0 %v792
  %869 = vmatpush1.msra.mxu0 %v791
  %870 = vmatprep.subr.mxu0 %v794
  %871 = vmatpush1.msra.mxu0 %v793
  %872 = vmatprep.subr.mxu0 %v796
  %873 = vmatpush1.msra.mxu0 %v795
  %874 = vmatprep.subr.mxu0 %v798
  %875 = vmatpush1.msra.mxu0 %v797
  %876 = vmatprep.subr.mxu0 %v800
  %877 = vmatpush1.msra.mxu0 %v799
  %878 = vmatprep.subr.mxu0 %v802
  %879 = vmatpush1.msra.mxu0 %v801
  %880 = vmatprep.subr.mxu0 %v804
  %881 = vmatpush1.msra.mxu0 %v803
  %882 = vmatprep.subr.mxu0 %v806
  %883 = vmatpush1.msra.mxu0 %v805
  %884 = vmatprep.mubr.f32.mxu0 %v741
  %885 = vmatmul.mubr.f32.gmra.mrb[0].mxu0 %v740
  %v886 = vpop.f32.mrb[0].mxu0
  %v887 = vadd.f32 %v813, %v886
  %v888 = vpop.f32.mrb[0].mxu0
  %v889 = vadd.f32 %v817, %v888
  %890 = vdwg.mxu0
  %v891 = vmul.f32 %v887, %v887
  %v892 = vmul.f32 %v889, %v889
  %v893 = vmul.f32 %v891, %v887
  %v894 = vmul.f32 %v892, %v889
  %v895 = vmax.f32 %v893, 0.0
  %v896 = vmax.f32 %v894, 0.0
  %s897 = scalar_lea.vmem %s5, 1024
  %v898 = vld [vmem:[%s897] sm:$0xff]
  %v899 = vld [vmem:[%s897 + $0x8] sm:$0xff]
  %v900 = vld [vmem:[%s897 + $0x10] sm:$0xff]
  %v901 = vld [vmem:[%s897 + $0x18] sm:$0xff]
  %v902 = vld [vmem:[%s897 + $0x20] sm:$0xff]
  %v903 = vld [vmem:[%s897 + $0x28] sm:$0xff]
  %v904 = vld [vmem:[%s897 + $0x30] sm:$0xff]
  %v905 = vld [vmem:[%s897 + $0x38] sm:$0xff]
  %v906 = vld [vmem:[%s897 + $0x40] sm:$0xff]
  %v907 = vld [vmem:[%s897 + $0x48] sm:$0xff]
  %v908 = vld [vmem:[%s897 + $0x50] sm:$0xff]
  %v909 = vld [vmem:[%s897 + $0x58] sm:$0xff]
  %v910 = vld [vmem:[%s897 + $0x60] sm:$0xff]
  %v911 = vld [vmem:[%s897 + $0x68] sm:$0xff]
  %v912 = vld [vmem:[%s897 + $0x70] sm:$0xff]
  %v913 = vld [vmem:[%s897 + $0x78] sm:$0xff]
  %v914 = vld [vmem:[%s897 + $0x80] sm:$0xff]
  %v915 = vld [vmem:[%s897 + $0x88] sm:$0xff]
  %v916 = vld [vmem:[%s897 + $0x90] sm:$0xff]
  %v917 = vld [vmem:[%s897 + $0x98] sm:$0xff]
  %v918 = vld [vmem:[%s897 + $0xa0] sm:$0xff]
  %v919 = vld [vmem:[%s897 + $0xa8] sm:$0xff]
  %v920 = vld [vmem:[%s897 + $0xb0] sm:$0xff]
  %v921 = vld [vmem:[%s897 + $0xb8] sm:$0xff]
  %v922 = vld [vmem:[%s897 + $0xc0] sm:$0xff]
  %v923 = vld [vmem:[%s897 + $0xc8] sm:$0xff]
  %v924 = vld [vmem:[%s897 + $0xd0] sm:$0xff]
  %v925 = vld [vmem:[%s897 + $0xd8] sm:$0xff]
  %v926 = vld [vmem:[%s897 + $0xe0] sm:$0xff]
  %v927 = vld [vmem:[%s897 + $0xe8] sm:$0xff]
  %v928 = vld [vmem:[%s897 + $0xf0] sm:$0xff]
  %v929 = vld [vmem:[%s897 + $0xf8] sm:$0xff]
  %v930 = vld [vmem:[%s897 + $0x100] sm:$0xff]
  %v931 = vld [vmem:[%s897 + $0x108] sm:$0xff]
  %v932 = vld [vmem:[%s897 + $0x110] sm:$0xff]
  %v933 = vld [vmem:[%s897 + $0x118] sm:$0xff]
  %v934 = vld [vmem:[%s897 + $0x120] sm:$0xff]
  %v935 = vld [vmem:[%s897 + $0x128] sm:$0xff]
  %v936 = vld [vmem:[%s897 + $0x130] sm:$0xff]
  %v937 = vld [vmem:[%s897 + $0x138] sm:$0xff]
  %v938 = vld [vmem:[%s897 + $0x140] sm:$0xff]
  %v939 = vld [vmem:[%s897 + $0x148] sm:$0xff]
  %v940 = vld [vmem:[%s897 + $0x150] sm:$0xff]
  %v941 = vld [vmem:[%s897 + $0x158] sm:$0xff]
  %v942 = vld [vmem:[%s897 + $0x160] sm:$0xff]
  %v943 = vld [vmem:[%s897 + $0x168] sm:$0xff]
  %v944 = vld [vmem:[%s897 + $0x170] sm:$0xff]
  %v945 = vld [vmem:[%s897 + $0x178] sm:$0xff]
  %v946 = vld [vmem:[%s897 + $0x180] sm:$0xff]
  %v947 = vld [vmem:[%s897 + $0x188] sm:$0xff]
  %v948 = vld [vmem:[%s897 + $0x190] sm:$0xff]
  %v949 = vld [vmem:[%s897 + $0x198] sm:$0xff]
  %v950 = vld [vmem:[%s897 + $0x1a0] sm:$0xff]
  %v951 = vld [vmem:[%s897 + $0x1a8] sm:$0xff]
  %v952 = vld [vmem:[%s897 + $0x1b0] sm:$0xff]
  %v953 = vld [vmem:[%s897 + $0x1b8] sm:$0xff]
  %v954 = vld [vmem:[%s897 + $0x1c0] sm:$0xff]
  %v955 = vld [vmem:[%s897 + $0x1c8] sm:$0xff]
  %v956 = vld [vmem:[%s897 + $0x1d0] sm:$0xff]
  %v957 = vld [vmem:[%s897 + $0x1d8] sm:$0xff]
  %v958 = vld [vmem:[%s897 + $0x1e0] sm:$0xff]
  %v959 = vld [vmem:[%s897 + $0x1e8] sm:$0xff]
  %v960 = vld [vmem:[%s897 + $0x1f0] sm:$0xff]
  %v961 = vld [vmem:[%s897 + $0x1f8] sm:$0xff]
  %s962 = scalar_lea.vmem %s6, 4
  %v963 = vld [vmem:[%s962] sm:$0x3]
  %v965 = vlaneseq
  %v966 = vshrl.u32 %v965, 7
  %v967 = vsub.s32 0, %v966
  %v968 = vrot.slane %v963, %v967
  %v969 = vlaneseq
  %v970 = vshrl.u32 %v969, 7
  %v971 = vsub.s32 1, %v970
  %v972 = vrot.slane %v963, %v971
  %975 = vmatprep.subr.mxu0 %v899
  %976 = vmatpush1.msra.mxu0 %v898
  %977 = vmatprep.subr.mxu0 %v901
  %978 = vmatpush1.msra.mxu0 %v900
  %979 = vmatprep.subr.mxu0 %v903
  %980 = vmatpush1.msra.mxu0 %v902
  %981 = vmatprep.subr.mxu0 %v905
  %982 = vmatpush1.msra.mxu0 %v904
  %983 = vmatprep.subr.mxu0 %v907
  %984 = vmatpush1.msra.mxu0 %v906
  %985 = vmatprep.subr.mxu0 %v909
  %986 = vmatpush1.msra.mxu0 %v908
  %987 = vmatprep.subr.mxu0 %v911
  %988 = vmatpush1.msra.mxu0 %v910
  %989 = vmatprep.subr.mxu0 %v913
  %990 = vmatpush1.msra.mxu0 %v912
  %991 = vmatprep.subr.mxu0 %v915
  %992 = vmatpush1.msra.mxu0 %v914
  %993 = vmatprep.subr.mxu0 %v917
  %994 = vmatpush1.msra.mxu0 %v916
  %995 = vmatprep.subr.mxu0 %v919
  %996 = vmatpush1.msra.mxu0 %v918
  %997 = vmatprep.subr.mxu0 %v921
  %998 = vmatpush1.msra.mxu0 %v920
  %999 = vmatprep.subr.mxu0 %v923
  %1000 = vmatpush1.msra.mxu0 %v922
  %1001 = vmatprep.subr.mxu0 %v925
  %1002 = vmatpush1.msra.mxu0 %v924
  %1003 = vmatprep.subr.mxu0 %v927
  %1004 = vmatpush1.msra.mxu0 %v926
  %1005 = vmatprep.subr.mxu0 %v929
  %1006 = vmatpush1.msra.mxu0 %v928
  %1007 = vmatprep.subr.mxu0 %v931
  %1008 = vmatpush1.msra.mxu0 %v930
  %1009 = vmatprep.subr.mxu0 %v933
  %1010 = vmatpush1.msra.mxu0 %v932
  %1011 = vmatprep.subr.mxu0 %v935
  %1012 = vmatpush1.msra.mxu0 %v934
  %1013 = vmatprep.subr.mxu0 %v937
  %1014 = vmatpush1.msra.mxu0 %v936
  %1015 = vmatprep.subr.mxu0 %v939
  %1016 = vmatpush1.msra.mxu0 %v938
  %1017 = vmatprep.subr.mxu0 %v941
  %1018 = vmatpush1.msra.mxu0 %v940
  %1019 = vmatprep.subr.mxu0 %v943
  %1020 = vmatpush1.msra.mxu0 %v942
  %1021 = vmatprep.subr.mxu0 %v945
  %1022 = vmatpush1.msra.mxu0 %v944
  %1023 = vmatprep.subr.mxu0 %v947
  %1024 = vmatpush1.msra.mxu0 %v946
  %1025 = vmatprep.subr.mxu0 %v949
  %1026 = vmatpush1.msra.mxu0 %v948
  %1027 = vmatprep.subr.mxu0 %v951
  %1028 = vmatpush1.msra.mxu0 %v950
  %1029 = vmatprep.subr.mxu0 %v953
  %1030 = vmatpush1.msra.mxu0 %v952
  %1031 = vmatprep.subr.mxu0 %v955
  %1032 = vmatpush1.msra.mxu0 %v954
  %1033 = vmatprep.subr.mxu0 %v957
  %1034 = vmatpush1.msra.mxu0 %v956
  %1035 = vmatprep.subr.mxu0 %v959
  %1036 = vmatpush1.msra.mxu0 %v958
  %1037 = vmatprep.subr.mxu0 %v961
  %1038 = vmatpush1.msra.mxu0 %v960
  %1039 = vmatprep.mubr.f32.mxu0 %v896
  %1040 = vmatmul.mubr.f32.gmra.mrb[0].mxu0 %v895
  %v1041 = vpop.f32.mrb[0].mxu0
  %v1042 = vadd.f32 %v968, %v1041
  %v1043 = vpop.f32.mrb[0].mxu0
  %v1044 = vadd.f32 %v972, %v1043
  %1045 = vdwg.mxu0
  %v1046 = vmul.f32 %v1042, %v1042
  %v1047 = vmul.f32 %v1044, %v1044
  %v1048 = vmul.f32 %v1046, %v1042
  %v1049 = vmul.f32 %v1047, %v1044
  %v1050 = vmax.f32 %v1048, 0.0
  %v1051 = vmax.f32 %v1049, 0.0
  %v1052 = vadd.f32 %v1050, %v740
  %v1053 = vadd.f32 %v1051, %v741
  %s1054 = scalar_lea.vmem %s3, 1536
  %v1055 = vld [vmem:[%s1054] sm:$0xff]
  %v1056 = vld [vmem:[%s1054 + $0x8] sm:$0xff]
  %v1057 = vld [vmem:[%s1054 + $0x10] sm:$0xff]
  %v1058 = vld [vmem:[%s1054 + $0x18] sm:$0xff]
  %v1059 = vld [vmem:[%s1054 + $0x20] sm:$0xff]
  %v1060 = vld [vmem:[%s1054 + $0x28] sm:$0xff]
  %v1061 = vld [vmem:[%s1054 + $0x30] sm:$0xff]
  %v1062 = vld [vmem:[%s1054 + $0x38] sm:$0xff]
  %v1063 = vld [vmem:[%s1054 + $0x40] sm:$0xff]
  %v1064 = vld [vmem:[%s1054 + $0x48] sm:$0xff]
  %v1065 = vld [vmem:[%s1054 + $0x50] sm:$0xff]
  %v1066 = vld [vmem:[%s1054 + $0x58] sm:$0xff]
  %v1067 = vld [vmem:[%s1054 + $0x60] sm:$0xff]
  %v1068 = vld [vmem:[%s1054 + $0x68] sm:$0xff]
  %v1069 = vld [vmem:[%s1054 + $0x70] sm:$0xff]
  %v1070 = vld [vmem:[%s1054 + $0x78] sm:$0xff]
  %v1071 = vld [vmem:[%s1054 + $0x80] sm:$0xff]
  %v1072 = vld [vmem:[%s1054 + $0x88] sm:$0xff]
  %v1073 = vld [vmem:[%s1054 + $0x90] sm:$0xff]
  %v1074 = vld [vmem:[%s1054 + $0x98] sm:$0xff]
  %v1075 = vld [vmem:[%s1054 + $0xa0] sm:$0xff]
  %v1076 = vld [vmem:[%s1054 + $0xa8] sm:$0xff]
  %v1077 = vld [vmem:[%s1054 + $0xb0] sm:$0xff]
  %v1078 = vld [vmem:[%s1054 + $0xb8] sm:$0xff]
  %v1079 = vld [vmem:[%s1054 + $0xc0] sm:$0xff]
  %v1080 = vld [vmem:[%s1054 + $0xc8] sm:$0xff]
  %v1081 = vld [vmem:[%s1054 + $0xd0] sm:$0xff]
  %v1082 = vld [vmem:[%s1054 + $0xd8] sm:$0xff]
  %v1083 = vld [vmem:[%s1054 + $0xe0] sm:$0xff]
  %v1084 = vld [vmem:[%s1054 + $0xe8] sm:$0xff]
  %v1085 = vld [vmem:[%s1054 + $0xf0] sm:$0xff]
  %v1086 = vld [vmem:[%s1054 + $0xf8] sm:$0xff]
  %v1087 = vld [vmem:[%s1054 + $0x100] sm:$0xff]
  %v1088 = vld [vmem:[%s1054 + $0x108] sm:$0xff]
  %v1089 = vld [vmem:[%s1054 + $0x110] sm:$0xff]
  %v1090 = vld [vmem:[%s1054 + $0x118] sm:$0xff]
  %v1091 = vld [vmem:[%s1054 + $0x120] sm:$0xff]
  %v1092 = vld [vmem:[%s1054 + $0x128] sm:$0xff]
  %v1093 = vld [vmem:[%s1054 + $0x130] sm:$0xff]
  %v1094 = vld [vmem:[%s1054 + $0x138] sm:$0xff]
  %v1095 = vld [vmem:[%s1054 + $0x140] sm:$0xff]
  %v1096 = vld [vmem:[%s1054 + $0x148] sm:$0xff]
  %v1097 = vld [vmem:[%s1054 + $0x150] sm:$0xff]
  %v1098 = vld [vmem:[%s1054 + $0x158] sm:$0xff]
  %v1099 = vld [vmem:[%s1054 + $0x160] sm:$0xff]
  %v1100 = vld [vmem:[%s1054 + $0x168] sm:$0xff]
  %v1101 = vld [vmem:[%s1054 + $0x170] sm:$0xff]
  %v1102 = vld [vmem:[%s1054 + $0x178] sm:$0xff]
  %v1103 = vld [vmem:[%s1054 + $0x180] sm:$0xff]
  %v1104 = vld [vmem:[%s1054 + $0x188] sm:$0xff]
  %v1105 = vld [vmem:[%s1054 + $0x190] sm:$0xff]
  %v1106 = vld [vmem:[%s1054 + $0x198] sm:$0xff]
  %v1107 = vld [vmem:[%s1054 + $0x1a0] sm:$0xff]
  %v1108 = vld [vmem:[%s1054 + $0x1a8] sm:$0xff]
  %v1109 = vld [vmem:[%s1054 + $0x1b0] sm:$0xff]
  %v1110 = vld [vmem:[%s1054 + $0x1b8] sm:$0xff]
  %v1111 = vld [vmem:[%s1054 + $0x1c0] sm:$0xff]
  %v1112 = vld [vmem:[%s1054 + $0x1c8] sm:$0xff]
  %v1113 = vld [vmem:[%s1054 + $0x1d0] sm:$0xff]
  %v1114 = vld [vmem:[%s1054 + $0x1d8] sm:$0xff]
  %v1115 = vld [vmem:[%s1054 + $0x1e0] sm:$0xff]
  %v1116 = vld [vmem:[%s1054 + $0x1e8] sm:$0xff]
  %v1117 = vld [vmem:[%s1054 + $0x1f0] sm:$0xff]
  %v1118 = vld [vmem:[%s1054 + $0x1f8] sm:$0xff]
  %s1119 = scalar_lea.vmem %s4, 6
  %v1120 = vld [vmem:[%s1119] sm:$0x3]
  %v1122 = vlaneseq
  %v1123 = vshrl.u32 %v1122, 7
  %v1124 = vsub.s32 0, %v1123
  %v1125 = vrot.slane %v1120, %v1124
  %v1126 = vlaneseq
  %v1127 = vshrl.u32 %v1126, 7
  %v1128 = vsub.s32 1, %v1127
  %v1129 = vrot.slane %v1120, %v1128
  %1132 = vmatprep.subr.mxu0 %v1056
  %1133 = vmatpush1.msra.mxu0 %v1055
  %1134 = vmatprep.subr.mxu0 %v1058
  %1135 = vmatpush1.msra.mxu0 %v1057
  %1136 = vmatprep.subr.mxu0 %v1060
  %1137 = vmatpush1.msra.mxu0 %v1059
  %1138 = vmatprep.subr.mxu0 %v1062
  %1139 = vmatpush1.msra.mxu0 %v1061
  %1140 = vmatprep.subr.mxu0 %v1064
  %1141 = vmatpush1.msra.mxu0 %v1063
  %1142 = vmatprep.subr.mxu0 %v1066
  %1143 = vmatpush1.msra.mxu0 %v1065
  %1144 = vmatprep.subr.mxu0 %v1068
  %1145 = vmatpush1.msra.mxu0 %v1067
  %1146 = vmatprep.subr.mxu0 %v1070
  %1147 = vmatpush1.msra.mxu0 %v1069
  %1148 = vmatprep.subr.mxu0 %v1072
  %1149 = vmatpush1.msra.mxu0 %v1071
  %1150 = vmatprep.subr.mxu0 %v1074
  %1151 = vmatpush1.msra.mxu0 %v1073
  %1152 = vmatprep.subr.mxu0 %v1076
  %1153 = vmatpush1.msra.mxu0 %v1075
  %1154 = vmatprep.subr.mxu0 %v1078
  %1155 = vmatpush1.msra.mxu0 %v1077
  %1156 = vmatprep.subr.mxu0 %v1080
  %1157 = vmatpush1.msra.mxu0 %v1079
  %1158 = vmatprep.subr.mxu0 %v1082
  %1159 = vmatpush1.msra.mxu0 %v1081
  %1160 = vmatprep.subr.mxu0 %v1084
  %1161 = vmatpush1.msra.mxu0 %v1083
  %1162 = vmatprep.subr.mxu0 %v1086
  %1163 = vmatpush1.msra.mxu0 %v1085
  %1164 = vmatprep.subr.mxu0 %v1088
  %1165 = vmatpush1.msra.mxu0 %v1087
  %1166 = vmatprep.subr.mxu0 %v1090
  %1167 = vmatpush1.msra.mxu0 %v1089
  %1168 = vmatprep.subr.mxu0 %v1092
  %1169 = vmatpush1.msra.mxu0 %v1091
  %1170 = vmatprep.subr.mxu0 %v1094
  %1171 = vmatpush1.msra.mxu0 %v1093
  %1172 = vmatprep.subr.mxu0 %v1096
  %1173 = vmatpush1.msra.mxu0 %v1095
  %1174 = vmatprep.subr.mxu0 %v1098
  %1175 = vmatpush1.msra.mxu0 %v1097
  %1176 = vmatprep.subr.mxu0 %v1100
  %1177 = vmatpush1.msra.mxu0 %v1099
  %1178 = vmatprep.subr.mxu0 %v1102
  %1179 = vmatpush1.msra.mxu0 %v1101
  %1180 = vmatprep.subr.mxu0 %v1104
  %1181 = vmatpush1.msra.mxu0 %v1103
  %1182 = vmatprep.subr.mxu0 %v1106
  %1183 = vmatpush1.msra.mxu0 %v1105
  %1184 = vmatprep.subr.mxu0 %v1108
  %1185 = vmatpush1.msra.mxu0 %v1107
  %1186 = vmatprep.subr.mxu0 %v1110
  %1187 = vmatpush1.msra.mxu0 %v1109
  %1188 = vmatprep.subr.mxu0 %v1112
  %1189 = vmatpush1.msra.mxu0 %v1111
  %1190 = vmatprep.subr.mxu0 %v1114
  %1191 = vmatpush1.msra.mxu0 %v1113
  %1192 = vmatprep.subr.mxu0 %v1116
  %1193 = vmatpush1.msra.mxu0 %v1115
  %1194 = vmatprep.subr.mxu0 %v1118
  %1195 = vmatpush1.msra.mxu0 %v1117
  %1196 = vmatprep.mubr.f32.mxu0 %v1053
  %1197 = vmatmul.mubr.f32.gmra.mrb[0].mxu0 %v1052
  %v1198 = vpop.f32.mrb[0].mxu0
  %v1199 = vadd.f32 %v1125, %v1198
  %v1200 = vpop.f32.mrb[0].mxu0
  %v1201 = vadd.f32 %v1129, %v1200
  %1202 = vdwg.mxu0
  %v1203 = vmul.f32 %v1199, %v1199
  %v1204 = vmul.f32 %v1201, %v1201
  %v1205 = vmul.f32 %v1203, %v1199
  %v1206 = vmul.f32 %v1204, %v1201
  %v1207 = vmax.f32 %v1205, 0.0
  %v1208 = vmax.f32 %v1206, 0.0
  %s1209 = scalar_lea.vmem %s5, 1536
  %v1210 = vld [vmem:[%s1209] sm:$0xff]
  %v1211 = vld [vmem:[%s1209 + $0x8] sm:$0xff]
  %v1212 = vld [vmem:[%s1209 + $0x10] sm:$0xff]
  %v1213 = vld [vmem:[%s1209 + $0x18] sm:$0xff]
  %v1214 = vld [vmem:[%s1209 + $0x20] sm:$0xff]
  %v1215 = vld [vmem:[%s1209 + $0x28] sm:$0xff]
  %v1216 = vld [vmem:[%s1209 + $0x30] sm:$0xff]
  %v1217 = vld [vmem:[%s1209 + $0x38] sm:$0xff]
  %v1218 = vld [vmem:[%s1209 + $0x40] sm:$0xff]
  %v1219 = vld [vmem:[%s1209 + $0x48] sm:$0xff]
  %v1220 = vld [vmem:[%s1209 + $0x50] sm:$0xff]
  %v1221 = vld [vmem:[%s1209 + $0x58] sm:$0xff]
  %v1222 = vld [vmem:[%s1209 + $0x60] sm:$0xff]
  %v1223 = vld [vmem:[%s1209 + $0x68] sm:$0xff]
  %v1224 = vld [vmem:[%s1209 + $0x70] sm:$0xff]
  %v1225 = vld [vmem:[%s1209 + $0x78] sm:$0xff]
  %v1226 = vld [vmem:[%s1209 + $0x80] sm:$0xff]
  %v1227 = vld [vmem:[%s1209 + $0x88] sm:$0xff]
  %v1228 = vld [vmem:[%s1209 + $0x90] sm:$0xff]
  %v1229 = vld [vmem:[%s1209 + $0x98] sm:$0xff]
  %v1230 = vld [vmem:[%s1209 + $0xa0] sm:$0xff]
  %v1231 = vld [vmem:[%s1209 + $0xa8] sm:$0xff]
  %v1232 = vld [vmem:[%s1209 + $0xb0] sm:$0xff]
  %v1233 = vld [vmem:[%s1209 + $0xb8] sm:$0xff]
  %v1234 = vld [vmem:[%s1209 + $0xc0] sm:$0xff]
  %v1235 = vld [vmem:[%s1209 + $0xc8] sm:$0xff]
  %v1236 = vld [vmem:[%s1209 + $0xd0] sm:$0xff]
  %v1237 = vld [vmem:[%s1209 + $0xd8] sm:$0xff]
  %v1238 = vld [vmem:[%s1209 + $0xe0] sm:$0xff]
  %v1239 = vld [vmem:[%s1209 + $0xe8] sm:$0xff]
  %v1240 = vld [vmem:[%s1209 + $0xf0] sm:$0xff]
  %v1241 = vld [vmem:[%s1209 + $0xf8] sm:$0xff]
  %v1242 = vld [vmem:[%s1209 + $0x100] sm:$0xff]
  %v1243 = vld [vmem:[%s1209 + $0x108] sm:$0xff]
  %v1244 = vld [vmem:[%s1209 + $0x110] sm:$0xff]
  %v1245 = vld [vmem:[%s1209 + $0x118] sm:$0xff]
  %v1246 = vld [vmem:[%s1209 + $0x120] sm:$0xff]
  %v1247 = vld [vmem:[%s1209 + $0x128] sm:$0xff]
  %v1248 = vld [vmem:[%s1209 + $0x130] sm:$0xff]
  %v1249 = vld [vmem:[%s1209 + $0x138] sm:$0xff]
  %v1250 = vld [vmem:[%s1209 + $0x140] sm:$0xff]
  %v1251 = vld [vmem:[%s1209 + $0x148] sm:$0xff]
  %v1252 = vld [vmem:[%s1209 + $0x150] sm:$0xff]
  %v1253 = vld [vmem:[%s1209 + $0x158] sm:$0xff]
  %v1254 = vld [vmem:[%s1209 + $0x160] sm:$0xff]
  %v1255 = vld [vmem:[%s1209 + $0x168] sm:$0xff]
  %v1256 = vld [vmem:[%s1209 + $0x170] sm:$0xff]
  %v1257 = vld [vmem:[%s1209 + $0x178] sm:$0xff]
  %v1258 = vld [vmem:[%s1209 + $0x180] sm:$0xff]
  %v1259 = vld [vmem:[%s1209 + $0x188] sm:$0xff]
  %v1260 = vld [vmem:[%s1209 + $0x190] sm:$0xff]
  %v1261 = vld [vmem:[%s1209 + $0x198] sm:$0xff]
  %v1262 = vld [vmem:[%s1209 + $0x1a0] sm:$0xff]
  %v1263 = vld [vmem:[%s1209 + $0x1a8] sm:$0xff]
  %v1264 = vld [vmem:[%s1209 + $0x1b0] sm:$0xff]
  %v1265 = vld [vmem:[%s1209 + $0x1b8] sm:$0xff]
  %v1266 = vld [vmem:[%s1209 + $0x1c0] sm:$0xff]
  %v1267 = vld [vmem:[%s1209 + $0x1c8] sm:$0xff]
  %v1268 = vld [vmem:[%s1209 + $0x1d0] sm:$0xff]
  %v1269 = vld [vmem:[%s1209 + $0x1d8] sm:$0xff]
  %v1270 = vld [vmem:[%s1209 + $0x1e0] sm:$0xff]
  %v1271 = vld [vmem:[%s1209 + $0x1e8] sm:$0xff]
  %v1272 = vld [vmem:[%s1209 + $0x1f0] sm:$0xff]
  %v1273 = vld [vmem:[%s1209 + $0x1f8] sm:$0xff]
  %s1274 = scalar_lea.vmem %s6, 6
  %v1275 = vld [vmem:[%s1274] sm:$0x3]
  %v1277 = vlaneseq
  %v1278 = vshrl.u32 %v1277, 7
  %v1279 = vsub.s32 0, %v1278
  %v1280 = vrot.slane %v1275, %v1279
  %v1281 = vlaneseq
  %v1282 = vshrl.u32 %v1281, 7
  %v1283 = vsub.s32 1, %v1282
  %v1284 = vrot.slane %v1275, %v1283
  %1287 = vmatprep.subr.mxu0 %v1211
  %1288 = vmatpush1.msra.mxu0 %v1210
  %1289 = vmatprep.subr.mxu0 %v1213
  %1290 = vmatpush1.msra.mxu0 %v1212
  %1291 = vmatprep.subr.mxu0 %v1215
  %1292 = vmatpush1.msra.mxu0 %v1214
  %1293 = vmatprep.subr.mxu0 %v1217
  %1294 = vmatpush1.msra.mxu0 %v1216
  %1295 = vmatprep.subr.mxu0 %v1219
  %1296 = vmatpush1.msra.mxu0 %v1218
  %1297 = vmatprep.subr.mxu0 %v1221
  %1298 = vmatpush1.msra.mxu0 %v1220
  %1299 = vmatprep.subr.mxu0 %v1223
  %1300 = vmatpush1.msra.mxu0 %v1222
  %1301 = vmatprep.subr.mxu0 %v1225
  %1302 = vmatpush1.msra.mxu0 %v1224
  %1303 = vmatprep.subr.mxu0 %v1227
  %1304 = vmatpush1.msra.mxu0 %v1226
  %1305 = vmatprep.subr.mxu0 %v1229
  %1306 = vmatpush1.msra.mxu0 %v1228
  %1307 = vmatprep.subr.mxu0 %v1231
  %1308 = vmatpush1.msra.mxu0 %v1230
  %1309 = vmatprep.subr.mxu0 %v1233
  %1310 = vmatpush1.msra.mxu0 %v1232
  %1311 = vmatprep.subr.mxu0 %v1235
  %1312 = vmatpush1.msra.mxu0 %v1234
  %1313 = vmatprep.subr.mxu0 %v1237
  %1314 = vmatpush1.msra.mxu0 %v1236
  %1315 = vmatprep.subr.mxu0 %v1239
  %1316 = vmatpush1.msra.mxu0 %v1238
  %1317 = vmatprep.subr.mxu0 %v1241
  %1318 = vmatpush1.msra.mxu0 %v1240
  %1319 = vmatprep.subr.mxu0 %v1243
  %1320 = vmatpush1.msra.mxu0 %v1242
  %1321 = vmatprep.subr.mxu0 %v1245
  %1322 = vmatpush1.msra.mxu0 %v1244
  %1323 = vmatprep.subr.mxu0 %v1247
  %1324 = vmatpush1.msra.mxu0 %v1246
  %1325 = vmatprep.subr.mxu0 %v1249
  %1326 = vmatpush1.msra.mxu0 %v1248
  %1327 = vmatprep.subr.mxu0 %v1251
  %1328 = vmatpush1.msra.mxu0 %v1250
  %1329 = vmatprep.subr.mxu0 %v1253
  %1330 = vmatpush1.msra.mxu0 %v1252
  %1331 = vmatprep.subr.mxu0 %v1255
  %1332 = vmatpush1.msra.mxu0 %v1254
  %1333 = vmatprep.subr.mxu0 %v1257
  %1334 = vmatpush1.msra.mxu0 %v1256
  %1335 = vmatprep.subr.mxu0 %v1259
  %1336 = vmatpush1.msra.mxu0 %v1258
  %1337 = vmatprep.subr.mxu0 %v1261
  %1338 = vmatpush1.msra.mxu0 %v1260
  %1339 = vmatprep.subr.mxu0 %v1263
  %1340 = vmatpush1.msra.mxu0 %v1262
  %1341 = vmatprep.subr.mxu0 %v1265
  %1342 = vmatpush1.msra.mxu0 %v1264
  %1343 = vmatprep.subr.mxu0 %v1267
  %1344 = vmatpush1.msra.mxu0 %v1266
  %1345 = vmatprep.subr.mxu0 %v1269
  %1346 = vmatpush1.msra.mxu0 %v1268
  %1347 = vmatprep.subr.mxu0 %v1271
  %1348 = vmatpush1.msra.mxu0 %v1270
  %1349 = vmatprep.subr.mxu0 %v1273
  %1350 = vmatpush1.msra.mxu0 %v1272
  %1351 = vmatprep.mubr.f32.mxu0 %v1208
  %1352 = vmatmul.mubr.f32.gmra.mrb[0].mxu0 %v1207
  %v1353 = vpop.f32.mrb[0].mxu0
  %v1354 = vadd.f32 %v1280, %v1353
  %v1355 = vpop.f32.mrb[0].mxu0
  %v1356 = vadd.f32 %v1284, %v1355
  %1357 = vdwg.mxu0
  %v1358 = vmul.f32 %v1354, %v1354
  %v1359 = vmul.f32 %v1356, %v1356
  %v1360 = vmul.f32 %v1358, %v1354
  %v1361 = vmul.f32 %v1359, %v1356
  %v1362 = vmax.f32 %v1360, 0.0
  %v1363 = vmax.f32 %v1361, 0.0
  %v1364 = vadd.f32 %v1362, %v1052
  %v1365 = vadd.f32 %v1363, %v1053
  %v1366 = vld [vmem:[%s7] sm:$0xff]
  %v1367 = vld [vmem:[%s7 + $0x8] sm:$0xff]
  %v1368 = vld [vmem:[%s7 + $0x10] sm:$0xff]
  %v1369 = vld [vmem:[%s7 + $0x18] sm:$0xff]
  %v1370 = vld [vmem:[%s7 + $0x20] sm:$0xff]
  %v1371 = vld [vmem:[%s7 + $0x28] sm:$0xff]
  %v1372 = vld [vmem:[%s7 + $0x30] sm:$0xff]
  %v1373 = vld [vmem:[%s7 + $0x38] sm:$0xff]
  %v1374 = vld [vmem:[%s7 + $0x40] sm:$0xff]
  %v1375 = vld [vmem:[%s7 + $0x48] sm:$0xff]
  %v1376 = vld [vmem:[%s7 + $0x50] sm:$0xff]
  %v1377 = vld [vmem:[%s7 + $0x58] sm:$0xff]
  %v1378 = vld [vmem:[%s7 + $0x60] sm:$0xff]
  %v1379 = vld [vmem:[%s7 + $0x68] sm:$0xff]
  %v1380 = vld [vmem:[%s7 + $0x70] sm:$0xff]
  %v1381 = vld [vmem:[%s7 + $0x78] sm:$0xff]
  %v1382 = vld [vmem:[%s7 + $0x80] sm:$0xff]
  %v1383 = vld [vmem:[%s7 + $0x88] sm:$0xff]
  %v1384 = vld [vmem:[%s7 + $0x90] sm:$0xff]
  %v1385 = vld [vmem:[%s7 + $0x98] sm:$0xff]
  %v1386 = vld [vmem:[%s7 + $0xa0] sm:$0xff]
  %v1387 = vld [vmem:[%s7 + $0xa8] sm:$0xff]
  %v1388 = vld [vmem:[%s7 + $0xb0] sm:$0xff]
  %v1389 = vld [vmem:[%s7 + $0xb8] sm:$0xff]
  %v1390 = vld [vmem:[%s7 + $0xc0] sm:$0xff]
  %v1391 = vld [vmem:[%s7 + $0xc8] sm:$0xff]
  %v1392 = vld [vmem:[%s7 + $0xd0] sm:$0xff]
  %v1393 = vld [vmem:[%s7 + $0xd8] sm:$0xff]
  %v1394 = vld [vmem:[%s7 + $0xe0] sm:$0xff]
  %v1395 = vld [vmem:[%s7 + $0xe8] sm:$0xff]
  %v1396 = vld [vmem:[%s7 + $0xf0] sm:$0xff]
  %v1397 = vld [vmem:[%s7 + $0xf8] sm:$0xff]
  %v1398 = vld [vmem:[%s8] sm:$0x1]
  %v1400 = vlaneseq
  %v1401 = vshrl.u32 %v1400, 7
  %v1402 = vsub.s32 0, %v1401
  %v1403 = vrot.slane %v1398, %v1402
  %1405 = vmatprep.subr.mxu0 0.0
  %1406 = vmatpush1.msra.mxu0 %v1366
  %1407 = vmatprep.subr.mxu0 0.0
  %1408 = vmatpush1.msra.mxu0 %v1367
  %1409 = vmatprep.subr.mxu0 0.0
  %1410 = vmatpush1.msra.mxu0 %v1368
  %1411 = vmatprep.subr.mxu0 0.0
  %1412 = vmatpush1.msra.mxu0 %v1369
  %1413 = vmatprep.subr.mxu0 0.0
  %1414 = vmatpush1.msra.mxu0 %v1370
  %1415 = vmatprep.subr.mxu0 0.0
  %1416 = vmatpush1.msra.mxu0 %v1371
  %1417 = vmatprep.subr.mxu0 0.0
  %1418 = vmatpush1.msra.mxu0 %v1372
  %1419 = vmatprep.subr.mxu0 0.0
  %1420 = vmatpush1.msra.mxu0 %v1373
  %1421 = vmatprep.subr.mxu0 0.0
  %1422 = vmatpush1.msra.mxu0 %v1374
  %1423 = vmatprep.subr.mxu0 0.0
  %1424 = vmatpush1.msra.mxu0 %v1375
  %1425 = vmatprep.subr.mxu0 0.0
  %1426 = vmatpush1.msra.mxu0 %v1376
  %1427 = vmatprep.subr.mxu0 0.0
  %1428 = vmatpush1.msra.mxu0 %v1377
  %1429 = vmatprep.subr.mxu0 0.0
  %1430 = vmatpush1.msra.mxu0 %v1378
  %1431 = vmatprep.subr.mxu0 0.0
  %1432 = vmatpush1.msra.mxu0 %v1379
  %1433 = vmatprep.subr.mxu0 0.0
  %1434 = vmatpush1.msra.mxu0 %v1380
  %1435 = vmatprep.subr.mxu0 0.0
  %1436 = vmatpush1.msra.mxu0 %v1381
  %1437 = vmatprep.subr.mxu0 0.0
  %1438 = vmatpush1.msra.mxu0 %v1382
  %1439 = vmatprep.subr.mxu0 0.0
  %1440 = vmatpush1.msra.mxu0 %v1383
  %1441 = vmatprep.subr.mxu0 0.0
  %1442 = vmatpush1.msra.mxu0 %v1384
  %1443 = vmatprep.subr.mxu0 0.0
  %1444 = vmatpush1.msra.mxu0 %v1385
  %1445 = vmatprep.subr.mxu0 0.0
  %1446 = vmatpush1.msra.mxu0 %v1386
  %1447 = vmatprep.subr.mxu0 0.0
  %1448 = vmatpush1.msra.mxu0 %v1387
  %1449 = vmatprep.subr.mxu0 0.0
  %1450 = vmatpush1.msra.mxu0 %v1388
  %1451 = vmatprep.subr.mxu0 0.0
  %1452 = vmatpush1.msra.mxu0 %v1389
  %1453 = vmatprep.subr.mxu0 0.0
  %1454 = vmatpush1.msra.mxu0 %v1390
  %1455 = vmatprep.subr.mxu0 0.0
  %1456 = vmatpush1.msra.mxu0 %v1391
  %1457 = vmatprep.subr.mxu0 0.0
  %1458 = vmatpush1.msra.mxu0 %v1392
  %1459 = vmatprep.subr.mxu0 0.0
  %1460 = vmatpush1.msra.mxu0 %v1393
  %1461 = vmatprep.subr.mxu0 0.0
  %1462 = vmatpush1.msra.mxu0 %v1394
  %1463 = vmatprep.subr.mxu0 0.0
  %1464 = vmatpush1.msra.mxu0 %v1395
  %1465 = vmatprep.subr.mxu0 0.0
  %1466 = vmatpush1.msra.mxu0 %v1396
  %1467 = vmatprep.subr.mxu0 0.0
  %1468 = vmatpush1.msra.mxu0 %v1397
  %1469 = vmatprep.mubr.f32.mxu0 %v1365
  %1470 = vmatmul.mubr.f32.gmra.mrb[0].mxu0 %v1364
  %v1471 = vpop.f32.mrb[0].mxu0
  %v1472 = vadd.f32 %v1403, %v1471
  %v1473 = vpop.f32.mrb[0].mxu0
  %1474 = vdwg.mxu0
  %1475 = vst.msk [vmem:[%s9] sm:$0xff] %vm47, %v1472
  // Predicated region
  $region38: #{_ritz_forward.1} parent=0 // pred_check
    _
  $region39: #{_ritz_forward.1} parent=0 // pred_check_branch
    %1477 = sbr.rel (0) target = $region41
  $region40: #{_ritz_forward.1} parent=0 // pred_region
    _
  $region41: #{_ritz_forward.1} parent=0 // pred_fallthru
    _
  // Predicated region
  $region42: #{_ritz_forward.1} parent=0 // pred_check
    _
  $region43: #{_ritz_forward.1} parent=0 // pred_check_branch
    %1479 = sbr.rel (0) target = $region45
  $region44: #{_ritz_forward.1} parent=0 // pred_region
    _
  $region45: #{_ritz_forward.1} parent=0 // pred_fallthru
    _

</llo_original>
